<compile_context>
chip_gen: v5e
topology: v5e:2x2
jax: 0.10.0
libtpu: 0.0.40
codegen_flags: <defaults>
</compile_context>

<pallas_src>
import functools

import jax
import jax.numpy as jnp
from jax.experimental import pallas as pl
from jax.experimental.pallas import tpu as pltpu


# ----------------------------- Pallas kernel ------------------------------- #

def encoder_cls_kernel(
        x_ref, wq_ref, bq_ref, wkv_ref, bkv_ref, wo_ref, bo_ref,
        g1_ref, be1_ref, w1_ref, b1_ref, w2_ref, b2_ref, g2_ref, be2_ref,
        wc_ref, bc_ref, scores_ref, *, num_heads):
    """One batch element per grid step: 1-layer BERT-style encoder restricted
    to the CLS query row, fused with the hidden_to_label classifier."""
    x = x_ref[...]                                    # (S, D) f32
    S, D = x.shape
    H = num_heads
    Dh = D // H
    scale = 1.0 / (Dh ** 0.5)

    x16 = x.astype(jnp.bfloat16)

    # K / V for all rows with one fused lane-dense matmul (f32 accumulate).
    kv = (jnp.dot(x16, wkv_ref[...], preferred_element_type=jnp.float32)
          + bkv_ref[...])                             # (S, 2D) f32
    k = kv[:, :D]                                     # (S, D)
    v = kv[:, D:]                                     # (S, D)

    # Only the CLS row is consumed downstream ([:, :1, :] of a 1-layer
    # encoder), so Q / scores / softmax / context run on a single query row.
    q = (jnp.dot(x16[0:1, :], wq_ref[...], preferred_element_type=jnp.float32)
         + bq_ref[...]) * scale                       # (1, D) f32

    # Per-head attention for the CLS query; H is tiny and statically unrolled.
    # These per-head matmuls are negligible FLOPs, so they stay in f32.
    attn = bo_ref[...]                                # (1, D) f32 accumulator
    for h in range(H):
        sl = slice(h * Dh, (h + 1) * Dh)
        s = jnp.dot(q[:, sl], k[:, sl].T,
                    preferred_element_type=jnp.float32)          # (1, S)
        s = s - jnp.max(s, axis=-1, keepdims=True)
        p = jnp.exp(s)
        p = p * pl.reciprocal(jnp.sum(p, axis=-1, keepdims=True), approx=True)
        ctx = jnp.dot(p, v[:, sl],
                      preferred_element_type=jnp.float32)        # (1, Dh)
        # sum_h ctx_h @ Wo[h]  ==  concat_h(ctx_h) @ Wo
        attn = attn + jnp.dot(ctx.astype(jnp.bfloat16), wo_ref[h],
                              preferred_element_type=jnp.float32)  # (1, D)

    def layernorm(z, gamma, beta, eps=1e-12):
        mu = jnp.mean(z, axis=-1, keepdims=True)
        var = jnp.mean((z - mu) ** 2, axis=-1, keepdims=True)
        return (z - mu) * jax.lax.rsqrt(var + eps) * gamma + beta

    h1 = layernorm(x[0:1, :] + attn, g1_ref[...], be1_ref[...])    # (1, D)

    # FFN only for the CLS row.
    ff = (jnp.dot(h1.astype(jnp.bfloat16), w1_ref[...],
                  preferred_element_type=jnp.float32) + b1_ref[...])
    # TODO(synk): HF BERT's default gelu is the erf form; tanh approximation used here.
    ff = jax.nn.gelu(ff, approximate=True)
    ff = (jnp.dot(ff.astype(jnp.bfloat16), w2_ref[...],
                  preferred_element_type=jnp.float32) + b2_ref[...])
    h2 = layernorm(h1 + ff, g2_ref[...], be2_ref[...])              # (1, D)

    # Fused hidden_to_label; output lanes padded to 128 (lane-dense store).
    # Dropout(p=0) is the identity.
    scores_ref[...] = (jnp.dot(h2.astype(jnp.bfloat16), wc_ref[...],
                               preferred_element_type=jnp.float32) + bc_ref[...])


# ------------------------------ JAX wrapper --------------------------------- #

def class_model_forward(tokens, params, *, num_heads, max_length, nlabels):
    # inp = inp[:, :self.max_length]
    tokens = tokens[:, :max_length]
    B, S = tokens.shape
    D = params["tok_emb"].shape[1]
    F = params["w1"].shape[1]
    Lp = params["w_cls"].shape[1]                     # lane-padded label width (128)
    H = num_heads
    Dh = D // H

    # Embedding lookup (glue JAX outside the kernel): token + position.
    x = (jnp.take(params["tok_emb"], tokens, axis=0)
         + params["pos_emb"][:S][None, :, :]).astype(jnp.float32)   # (B, S, D)

    kernel = functools.partial(encoder_cls_kernel, num_heads=num_heads)
    res2 = lambda b: (0, 0)        # weights: same block every grid step (resident)

    scores = pl.pallas_call(
        kernel,
        out_shape=jax.ShapeDtypeStruct((B, 1, Lp), jnp.float32),
        grid_spec=pltpu.PrefetchScalarGridSpec(
            num_scalar_prefetch=0,
            grid=(B,),
            in_specs=[
                pl.BlockSpec((None, S, D), lambda b: (b, 0, 0)),    # x (per batch)
                pl.BlockSpec((D, D), res2),                         # wq
                pl.BlockSpec((1, D), res2),                         # bq
                pl.BlockSpec((D, 2 * D), res2),                     # wkv
                pl.BlockSpec((1, 2 * D), res2),                     # bkv
                pl.BlockSpec((H, Dh, D), lambda b: (0, 0, 0)),      # wo (per-head rows)
                pl.BlockSpec((1, D), res2),                         # bo
                pl.BlockSpec((1, D), res2),                         # g1
                pl.BlockSpec((1, D), res2),                         # be1
                pl.BlockSpec((D, F), res2),                         # w1
                pl.BlockSpec((1, F), res2),                         # b1
                pl.BlockSpec((F, D), res2),                         # w2
                pl.BlockSpec((1, D), res2),                         # b2
                pl.BlockSpec((1, D), res2),                         # g2
                pl.BlockSpec((1, D), res2),                         # be2
                pl.BlockSpec((D, Lp), res2),                        # w_cls
                pl.BlockSpec((1, Lp), res2),                        # b_cls
            ],
            out_specs=pl.BlockSpec((None, 1, Lp), lambda b: (b, 0, 0)),
        ),
        compiler_params=pltpu.CompilerParams(
            dimension_semantics=("parallel",),   # batch axis -> both TCs on v7x
            vmem_limit_bytes=64 * 1024 * 1024,
        ),
    )(x,
      params["wq"], params["bq"], params["wkv"], params["bkv"],
      params["wo"], params["bo"], params["g1"], params["be1"],
      params["w1"], params["b1"], params["w2"], params["b2"],
      params["g2"], params["be2"], params["w_cls"], params["b_cls"])

    scores = scores.reshape(B, Lp)[:, :nlabels]
    if B == 1:
        # torch .squeeze() on (1, 1, D) gives (D,) -> Linear -> (nlabels,)
        scores = scores[0]
    return scores


# --------------------------- pure-JAX reference ----------------------------- #

def reference_forward(tokens, params, *, num_heads, max_length, nlabels):
    """f32 reference: full 1-layer encoder over all rows, then CLS + classifier."""
    tokens = tokens[:, :max_length]
    B, S = tokens.shape
    D = params["tok_emb"].shape[1]
    H = num_heads
    Dh = D // H
    f32 = lambda a: a.astype(jnp.float32)

    x = (jnp.take(params["tok_emb"], tokens, axis=0)
         + params["pos_emb"][:S][None, :, :]).astype(jnp.float32)   # (B, S, D)

    wkv = f32(params["wkv"])
    q = x @ f32(params["wq"]) + params["bq"]
    k = x @ wkv[:, :D] + params["bkv"][:, :D]
    v = x @ wkv[:, D:] + params["bkv"][:, D:]

    def heads(t):
        return t.reshape(B, S, H, Dh).transpose(0, 2, 1, 3)
    s = jnp.einsum('bhqd,bhkd->bhqk', heads(q), heads(k)) / (Dh ** 0.5)
    p = jax.nn.softmax(s, axis=-1)
    ctx = jnp.einsum('bhqk,bhkd->bhqd', p, heads(v))
    ctx = ctx.transpose(0, 2, 1, 3).reshape(B, S, D)
    attn = ctx @ f32(params["wo"]).reshape(D, D) + params["bo"]

    def ln(z, g, b, eps=1e-12):
        mu = z.mean(-1, keepdims=True)
        var = ((z - mu) ** 2).mean(-1, keepdims=True)
        return (z - mu) * jax.lax.rsqrt(var + eps) * g + b

    h1 = ln(x + attn, params["g1"], params["be1"])
    ff = jax.nn.gelu(h1 @ f32(params["w1"]) + params["b1"], approximate=True)
    ff = ff @ f32(params["w2"]) + params["b2"]
    h2 = ln(h1 + ff, params["g2"], params["be2"])

    cls = h2[:, 0, :]                                                # (B, D)
    scores = (cls @ f32(params["w_cls"]) + params["b_cls"])[:, :nlabels]
    if B == 1:
        scores = scores[0]
    return scores


# -------------------------- deterministic params ---------------------------- #

def make_params(key, vocab, max_pos, D, F, nlabels, num_heads, lanes=128):
    H = num_heads
    Dh = D // H
    ks = jax.random.split(key, 16)

    def n(k, shape, s=0.02):
        return (s * jax.random.normal(k, shape)).astype(jnp.float32)

    wq, wk, wv, wo = (n(ks[i], (D, D)) for i in range(4))
    w1 = n(ks[4], (D, F))
    w2 = n(ks[5], (F, D))

    Lp = ((nlabels + lanes - 1) // lanes) * lanes
    w_cls = n(ks[6], (D, nlabels))
    b_cls = n(ks[7], (1, nlabels))
    w_cls_p = jnp.pad(w_cls, ((0, 0), (0, Lp - nlabels))).astype(jnp.bfloat16)
    b_cls_p = jnp.pad(b_cls, ((0, 0), (0, Lp - nlabels))).astype(jnp.float32)

    return {
        "tok_emb": n(ks[8], (vocab, D)),
        "pos_emb": n(ks[9], (max_pos, D)),
        "wq": wq.astype(jnp.bfloat16), "bq": n(ks[10], (1, D)),
        "wkv": jnp.concatenate([wk, wv], axis=1).astype(jnp.bfloat16),
        "bkv": n(ks[11], (1, 2 * D)),
        "wo": wo.reshape(H, Dh, D).astype(jnp.bfloat16), "bo": n(ks[12], (1, D)),
        "g1": jnp.ones((1, D), jnp.float32), "be1": jnp.zeros((1, D), jnp.float32),
        "w1": w1.astype(jnp.bfloat16), "b1": n(ks[13], (1, F)),
        "w2": w2.astype(jnp.bfloat16), "b2": n(ks[14], (1, D)),
        "g2": jnp.ones((1, D), jnp.float32), "be2": jnp.zeros((1, D), jnp.float32),
        "w_cls": w_cls_p, "b_cls": b_cls_p,
    }


if __name__ == "__main__":
    # Small config consistent with the module: hidden D=32, seq=8, batch=2,
    # nlabels=4; max_position_embeddings=512 -> max_length=510 (no-op at S=8).
    B, S, D, H, F = 2, 8, 32, 4, 64
    VOCAB, MAX_POS, NLABELS = 100, 512, 4
    MAX_LENGTH = MAX_POS - 2

    key = jax.random.PRNGKey(0)
    k_tok, k_par = jax.random.split(key)
    tokens = jax.random.randint(k_tok, (B, S), 0, VOCAB, dtype=jnp.int32)
    params = make_params(k_par, VOCAB, MAX_POS, D, F, NLABELS, num_heads=H)

    out = class_model_forward(tokens, params, num_heads=H,
                              max_length=MAX_LENGTH, nlabels=NLABELS)
    out = jax.block_until_ready(out)
    assert out.shape == (B, NLABELS) and out.dtype == jnp.float32

    ref = reference_forward(tokens, params, num_heads=H,
                            max_length=MAX_LENGTH, nlabels=NLABELS)
    assert jnp.allclose(out, ref, atol=3e-2, rtol=3e-2), (out, ref)

    # TODO(synk): pretrained AutoModel weights cannot be reproduced; encoder is a
    # deterministic synthetic 1-layer BERT-style stand-in.
    print("KERNEL_OK")
</pallas_src>

<mosaic_0001>
module attributes {stable_mosaic.version = 11 : i64} {
  func.func @encoder_cls_kernel(%arg0: i32, %arg1: memref<1x8x32xf32, #tpu.memory_space<vmem>>, %arg2: memref<32x32xbf16, #tpu.memory_space<vmem>>, %arg3: memref<1x32xf32, #tpu.memory_space<vmem>>, %arg4: memref<32x64xbf16, #tpu.memory_space<vmem>>, %arg5: memref<1x64xf32, #tpu.memory_space<vmem>>, %arg6: memref<4x8x32xbf16, #tpu.memory_space<vmem>>, %arg7: memref<1x32xf32, #tpu.memory_space<vmem>>, %arg8: memref<1x32xf32, #tpu.memory_space<vmem>>, %arg9: memref<1x32xf32, #tpu.memory_space<vmem>>, %arg10: memref<32x64xbf16, #tpu.memory_space<vmem>>, %arg11: memref<1x64xf32, #tpu.memory_space<vmem>>, %arg12: memref<64x32xbf16, #tpu.memory_space<vmem>>, %arg13: memref<1x32xf32, #tpu.memory_space<vmem>>, %arg14: memref<1x32xf32, #tpu.memory_space<vmem>>, %arg15: memref<1x32xf32, #tpu.memory_space<vmem>>, %arg16: memref<32x128xbf16, #tpu.memory_space<vmem>>, %arg17: memref<1x128xf32, #tpu.memory_space<vmem>>, %arg18: memref<1x1x128xf32, #tpu.memory_space<vmem>>) attributes {dimension_semantics = [#tpu.dimension_semantics<parallel>], iteration_bounds = array<i64: 2>, scalar_prefetch = 0 : i64, scratch_operands = 0 : i64, tpu.core_type = #tpu.core_type<tc>, window_params = [{transform_indices = @transform_0, window_bounds = array<i64: 1, 8, 32>}, {pipeline_mode = #tpu.pipeline_mode<synchronous>, transform_indices = @transform_1, window_bounds = array<i64: 32, 32>}, {pipeline_mode = #tpu.pipeline_mode<synchronous>, transform_indices = @transform_2, window_bounds = array<i64: 1, 32>}, {pipeline_mode = #tpu.pipeline_mode<synchronous>, transform_indices = @transform_3, window_bounds = array<i64: 32, 64>}, {pipeline_mode = #tpu.pipeline_mode<synchronous>, transform_indices = @transform_4, window_bounds = array<i64: 1, 64>}, {pipeline_mode = #tpu.pipeline_mode<synchronous>, transform_indices = @transform_5, window_bounds = array<i64: 4, 8, 32>}, {pipeline_mode = #tpu.pipeline_mode<synchronous>, transform_indices = @transform_6, window_bounds = array<i64: 1, 32>}, {pipeline_mode = #tpu.pipeline_mode<synchronous>, transform_indices = @transform_7, window_bounds = array<i64: 1, 32>}, {pipeline_mode = #tpu.pipeline_mode<synchronous>, transform_indices = @transform_8, window_bounds = array<i64: 1, 32>}, {pipeline_mode = #tpu.pipeline_mode<synchronous>, transform_indices = @transform_9, window_bounds = array<i64: 32, 64>}, {pipeline_mode = #tpu.pipeline_mode<synchronous>, transform_indices = @transform_10, window_bounds = array<i64: 1, 64>}, {pipeline_mode = #tpu.pipeline_mode<synchronous>, transform_indices = @transform_11, window_bounds = array<i64: 64, 32>}, {pipeline_mode = #tpu.pipeline_mode<synchronous>, transform_indices = @transform_12, window_bounds = array<i64: 1, 32>}, {pipeline_mode = #tpu.pipeline_mode<synchronous>, transform_indices = @transform_13, window_bounds = array<i64: 1, 32>}, {pipeline_mode = #tpu.pipeline_mode<synchronous>, transform_indices = @transform_14, window_bounds = array<i64: 1, 32>}, {pipeline_mode = #tpu.pipeline_mode<synchronous>, transform_indices = @transform_15, window_bounds = array<i64: 32, 128>}, {pipeline_mode = #tpu.pipeline_mode<synchronous>, transform_indices = @transform_16, window_bounds = array<i64: 1, 128>}, {transform_indices = @transform_17, window_bounds = array<i64: 1, 1, 128>}]} {
    %c0 = arith.constant 0 : index
    %c0_0 = arith.constant 0 : index
    %c0_1 = arith.constant 0 : index
    %0 = vector.load %arg1[%c0, %c0_0, %c0_1] : memref<1x8x32xf32, #tpu.memory_space<vmem>>, vector<1x8x32xf32>
    %1 = vector.shape_cast %0 : vector<1x8x32xf32> to vector<8x32xf32>
    %2 = arith.truncf %1 : vector<8x32xf32> to vector<8x32xbf16>
    %c0_2 = arith.constant 0 : index
    %c0_3 = arith.constant 0 : index
    %3 = vector.load %arg4[%c0_2, %c0_3] : memref<32x64xbf16, #tpu.memory_space<vmem>>, vector<32x64xbf16>
    %cst = arith.constant dense<0.000000e+00> : vector<8x64xf32>
    %4 = tpu.matmul %2, %3, %cst {dimension_numbers = #tpu.dot_dimension_numbers<[1], [0], [0], [1], [0, 0, 1, 1], [], []>} : vector<8x32xbf16>, vector<32x64xbf16>, vector<8x64xf32> -> vector<8x64xf32>
    %c0_4 = arith.constant 0 : index
    %c0_5 = arith.constant 0 : index
    %5 = vector.load %arg5[%c0_4, %c0_5] : memref<1x64xf32, #tpu.memory_space<vmem>>, vector<1x64xf32>
    %6 = vector.broadcast %5 : vector<1x64xf32> to vector<8x64xf32>
    %7 = arith.addf %4, %6 : vector<8x64xf32>
    %8 = vector.extract_strided_slice %7 {offsets = [0, 0], sizes = [8, 32], strides = [1, 1]} : vector<8x64xf32> to vector<8x32xf32>
    %9 = vector.extract_strided_slice %7 {offsets = [0, 32], sizes = [8, 32], strides = [1, 1]} : vector<8x64xf32> to vector<8x32xf32>
    %10 = vector.extract_strided_slice %2 {offsets = [0, 0], sizes = [1, 32], strides = [1, 1]} : vector<8x32xbf16> to vector<1x32xbf16>
    %c0_6 = arith.constant 0 : index
    %c0_7 = arith.constant 0 : index
    %11 = vector.load %arg2[%c0_6, %c0_7] : memref<32x32xbf16, #tpu.memory_space<vmem>>, vector<32x32xbf16>
    %cst_8 = arith.constant dense<0.000000e+00> : vector<1x32xf32>
    %12 = tpu.matmul %10, %11, %cst_8 {dimension_numbers = #tpu.dot_dimension_numbers<[1], [0], [0], [1], [0, 0, 1, 1], [], []>} : vector<1x32xbf16>, vector<32x32xbf16>, vector<1x32xf32> -> vector<1x32xf32>
    %c0_9 = arith.constant 0 : index
    %c0_10 = arith.constant 0 : index
    %13 = vector.load %arg3[%c0_9, %c0_10] : memref<1x32xf32, #tpu.memory_space<vmem>>, vector<1x32xf32>
    %14 = arith.addf %12, %13 : vector<1x32xf32>
    %cst_11 = arith.constant 0.353553385 : f32
    %15 = vector.broadcast %cst_11 : f32 to vector<1x32xf32>
    %16 = arith.mulf %14, %15 : vector<1x32xf32>
    %c0_12 = arith.constant 0 : index
    %c0_13 = arith.constant 0 : index
    %17 = vector.load %arg7[%c0_12, %c0_13] : memref<1x32xf32, #tpu.memory_space<vmem>>, vector<1x32xf32>
    %18 = vector.extract_strided_slice %16 {offsets = [0, 0], sizes = [1, 8], strides = [1, 1]} : vector<1x32xf32> to vector<1x8xf32>
    %19 = vector.extract_strided_slice %8 {offsets = [0, 0], sizes = [8, 8], strides = [1, 1]} : vector<8x32xf32> to vector<8x8xf32>
    %20 = tpu.transpose %19, [1, 0] : vector<8x8xf32> -> vector<8x8xf32>
    %cst_14 = arith.constant dense<0.000000e+00> : vector<1x8xf32>
    %21 = tpu.matmul %18, %20, %cst_14 {dimension_numbers = #tpu.dot_dimension_numbers<[1], [0], [0], [1], [0, 0, 1, 1], [], []>} : vector<1x8xf32>, vector<8x8xf32>, vector<1x8xf32> -> vector<1x8xf32>
    %cst_15 = arith.constant dense<0xFF800000> : vector<1xf32>
    %22 = vector.multi_reduction <maximumf>, %21, %cst_15 [1] : vector<1x8xf32> to vector<1xf32>
    %23 = vector.shape_cast %22 : vector<1xf32> to vector<1x1xf32>
    %24 = vector.broadcast %23 : vector<1x1xf32> to vector<1x8xf32>
    %25 = arith.subf %21, %24 : vector<1x8xf32>
    %26 = math.exp %25 : vector<1x8xf32>
    %cst_16 = arith.constant dense<0.000000e+00> : vector<1xf32>
    %27 = vector.multi_reduction <add>, %26, %cst_16 [1] : vector<1x8xf32> to vector<1xf32>
    %28 = vector.shape_cast %27 : vector<1xf32> to vector<1x1xf32>
    %29 = tpu.reciprocal %28 {approx = true} : vector<1x1xf32> -> vector<1x1xf32>
    %30 = vector.broadcast %29 : vector<1x1xf32> to vector<1x8xf32>
    %31 = arith.mulf %26, %30 : vector<1x8xf32>
    %32 = vector.extract_strided_slice %9 {offsets = [0, 0], sizes = [8, 8], strides = [1, 1]} : vector<8x32xf32> to vector<8x8xf32>
    %cst_17 = arith.constant dense<0.000000e+00> : vector<1x8xf32>
    %33 = tpu.matmul %31, %32, %cst_17 {dimension_numbers = #tpu.dot_dimension_numbers<[1], [0], [0], [1], [0, 0, 1, 1], [], []>} : vector<1x8xf32>, vector<8x8xf32>, vector<1x8xf32> -> vector<1x8xf32>
    %34 = arith.truncf %33 : vector<1x8xf32> to vector<1x8xbf16>
    %c0_18 = arith.constant 0 : index
    %c0_19 = arith.constant 0 : index
    %c0_20 = arith.constant 0 : index
    %35 = vector.load %arg6[%c0_18, %c0_19, %c0_20] : memref<4x8x32xbf16, #tpu.memory_space<vmem>>, vector<1x8x32xbf16>
    %36 = vector.shape_cast %35 : vector<1x8x32xbf16> to vector<8x32xbf16>
    %cst_21 = arith.constant dense<0.000000e+00> : vector<1x32xf32>
    %37 = tpu.matmul %34, %36, %cst_21 {dimension_numbers = #tpu.dot_dimension_numbers<[1], [0], [0], [1], [0, 0, 1, 1], [], []>} : vector<1x8xbf16>, vector<8x32xbf16>, vector<1x32xf32> -> vector<1x32xf32>
    %38 = arith.addf %17, %37 : vector<1x32xf32>
    %39 = vector.extract_strided_slice %16 {offsets = [0, 8], sizes = [1, 8], strides = [1, 1]} : vector<1x32xf32> to vector<1x8xf32>
    %40 = vector.extract_strided_slice %8 {offsets = [0, 8], sizes = [8, 8], strides = [1, 1]} : vector<8x32xf32> to vector<8x8xf32>
    %41 = tpu.transpose %40, [1, 0] : vector<8x8xf32> -> vector<8x8xf32>
    %cst_22 = arith.constant dense<0.000000e+00> : vector<1x8xf32>
    %42 = tpu.matmul %39, %41, %cst_22 {dimension_numbers = #tpu.dot_dimension_numbers<[1], [0], [0], [1], [0, 0, 1, 1], [], []>} : vector<1x8xf32>, vector<8x8xf32>, vector<1x8xf32> -> vector<1x8xf32>
    %cst_23 = arith.constant dense<0xFF800000> : vector<1xf32>
    %43 = vector.multi_reduction <maximumf>, %42, %cst_23 [1] : vector<1x8xf32> to vector<1xf32>
    %44 = vector.shape_cast %43 : vector<1xf32> to vector<1x1xf32>
    %45 = vector.broadcast %44 : vector<1x1xf32> to vector<1x8xf32>
    %46 = arith.subf %42, %45 : vector<1x8xf32>
    %47 = math.exp %46 : vector<1x8xf32>
    %cst_24 = arith.constant dense<0.000000e+00> : vector<1xf32>
    %48 = vector.multi_reduction <add>, %47, %cst_24 [1] : vector<1x8xf32> to vector<1xf32>
    %49 = vector.shape_cast %48 : vector<1xf32> to vector<1x1xf32>
    %50 = tpu.reciprocal %49 {approx = true} : vector<1x1xf32> -> vector<1x1xf32>
    %51 = vector.broadcast %50 : vector<1x1xf32> to vector<1x8xf32>
    %52 = arith.mulf %47, %51 : vector<1x8xf32>
    %53 = vector.extract_strided_slice %9 {offsets = [0, 8], sizes = [8, 8], strides = [1, 1]} : vector<8x32xf32> to vector<8x8xf32>
    %cst_25 = arith.constant dense<0.000000e+00> : vector<1x8xf32>
    %54 = tpu.matmul %52, %53, %cst_25 {dimension_numbers = #tpu.dot_dimension_numbers<[1], [0], [0], [1], [0, 0, 1, 1], [], []>} : vector<1x8xf32>, vector<8x8xf32>, vector<1x8xf32> -> vector<1x8xf32>
    %55 = arith.truncf %54 : vector<1x8xf32> to vector<1x8xbf16>
    %c1 = arith.constant 1 : index
    %c0_26 = arith.constant 0 : index
    %c0_27 = arith.constant 0 : index
    %56 = vector.load %arg6[%c1, %c0_26, %c0_27] : memref<4x8x32xbf16, #tpu.memory_space<vmem>>, vector<1x8x32xbf16>
    %57 = vector.shape_cast %56 : vector<1x8x32xbf16> to vector<8x32xbf16>
    %cst_28 = arith.constant dense<0.000000e+00> : vector<1x32xf32>
    %58 = tpu.matmul %55, %57, %cst_28 {dimension_numbers = #tpu.dot_dimension_numbers<[1], [0], [0], [1], [0, 0, 1, 1], [], []>} : vector<1x8xbf16>, vector<8x32xbf16>, vector<1x32xf32> -> vector<1x32xf32>
    %59 = arith.addf %38, %58 : vector<1x32xf32>
    %60 = vector.extract_strided_slice %16 {offsets = [0, 16], sizes = [1, 8], strides = [1, 1]} : vector<1x32xf32> to vector<1x8xf32>
    %61 = vector.extract_strided_slice %8 {offsets = [0, 16], sizes = [8, 8], strides = [1, 1]} : vector<8x32xf32> to vector<8x8xf32>
    %62 = tpu.transpose %61, [1, 0] : vector<8x8xf32> -> vector<8x8xf32>
    %cst_29 = arith.constant dense<0.000000e+00> : vector<1x8xf32>
    %63 = tpu.matmul %60, %62, %cst_29 {dimension_numbers = #tpu.dot_dimension_numbers<[1], [0], [0], [1], [0, 0, 1, 1], [], []>} : vector<1x8xf32>, vector<8x8xf32>, vector<1x8xf32> -> vector<1x8xf32>
    %cst_30 = arith.constant dense<0xFF800000> : vector<1xf32>
    %64 = vector.multi_reduction <maximumf>, %63, %cst_30 [1] : vector<1x8xf32> to vector<1xf32>
    %65 = vector.shape_cast %64 : vector<1xf32> to vector<1x1xf32>
    %66 = vector.broadcast %65 : vector<1x1xf32> to vector<1x8xf32>
    %67 = arith.subf %63, %66 : vector<1x8xf32>
    %68 = math.exp %67 : vector<1x8xf32>
    %cst_31 = arith.constant dense<0.000000e+00> : vector<1xf32>
    %69 = vector.multi_reduction <add>, %68, %cst_31 [1] : vector<1x8xf32> to vector<1xf32>
    %70 = vector.shape_cast %69 : vector<1xf32> to vector<1x1xf32>
    %71 = tpu.reciprocal %70 {approx = true} : vector<1x1xf32> -> vector<1x1xf32>
    %72 = vector.broadcast %71 : vector<1x1xf32> to vector<1x8xf32>
    %73 = arith.mulf %68, %72 : vector<1x8xf32>
    %74 = vector.extract_strided_slice %9 {offsets = [0, 16], sizes = [8, 8], strides = [1, 1]} : vector<8x32xf32> to vector<8x8xf32>
    %cst_32 = arith.constant dense<0.000000e+00> : vector<1x8xf32>
    %75 = tpu.matmul %73, %74, %cst_32 {dimension_numbers = #tpu.dot_dimension_numbers<[1], [0], [0], [1], [0, 0, 1, 1], [], []>} : vector<1x8xf32>, vector<8x8xf32>, vector<1x8xf32> -> vector<1x8xf32>
    %76 = arith.truncf %75 : vector<1x8xf32> to vector<1x8xbf16>
    %c2 = arith.constant 2 : index
    %c0_33 = arith.constant 0 : index
    %c0_34 = arith.constant 0 : index
    %77 = vector.load %arg6[%c2, %c0_33, %c0_34] : memref<4x8x32xbf16, #tpu.memory_space<vmem>>, vector<1x8x32xbf16>
    %78 = vector.shape_cast %77 : vector<1x8x32xbf16> to vector<8x32xbf16>
    %cst_35 = arith.constant dense<0.000000e+00> : vector<1x32xf32>
    %79 = tpu.matmul %76, %78, %cst_35 {dimension_numbers = #tpu.dot_dimension_numbers<[1], [0], [0], [1], [0, 0, 1, 1], [], []>} : vector<1x8xbf16>, vector<8x32xbf16>, vector<1x32xf32> -> vector<1x32xf32>
    %80 = arith.addf %59, %79 : vector<1x32xf32>
    %81 = vector.extract_strided_slice %16 {offsets = [0, 24], sizes = [1, 8], strides = [1, 1]} : vector<1x32xf32> to vector<1x8xf32>
    %82 = vector.extract_strided_slice %8 {offsets = [0, 24], sizes = [8, 8], strides = [1, 1]} : vector<8x32xf32> to vector<8x8xf32>
    %83 = tpu.transpose %82, [1, 0] : vector<8x8xf32> -> vector<8x8xf32>
    %cst_36 = arith.constant dense<0.000000e+00> : vector<1x8xf32>
    %84 = tpu.matmul %81, %83, %cst_36 {dimension_numbers = #tpu.dot_dimension_numbers<[1], [0], [0], [1], [0, 0, 1, 1], [], []>} : vector<1x8xf32>, vector<8x8xf32>, vector<1x8xf32> -> vector<1x8xf32>
    %cst_37 = arith.constant dense<0xFF800000> : vector<1xf32>
    %85 = vector.multi_reduction <maximumf>, %84, %cst_37 [1] : vector<1x8xf32> to vector<1xf32>
    %86 = vector.shape_cast %85 : vector<1xf32> to vector<1x1xf32>
    %87 = vector.broadcast %86 : vector<1x1xf32> to vector<1x8xf32>
    %88 = arith.subf %84, %87 : vector<1x8xf32>
    %89 = math.exp %88 : vector<1x8xf32>
    %cst_38 = arith.constant dense<0.000000e+00> : vector<1xf32>
    %90 = vector.multi_reduction <add>, %89, %cst_38 [1] : vector<1x8xf32> to vector<1xf32>
    %91 = vector.shape_cast %90 : vector<1xf32> to vector<1x1xf32>
    %92 = tpu.reciprocal %91 {approx = true} : vector<1x1xf32> -> vector<1x1xf32>
    %93 = vector.broadcast %92 : vector<1x1xf32> to vector<1x8xf32>
    %94 = arith.mulf %89, %93 : vector<1x8xf32>
    %95 = vector.extract_strided_slice %9 {offsets = [0, 24], sizes = [8, 8], strides = [1, 1]} : vector<8x32xf32> to vector<8x8xf32>
    %cst_39 = arith.constant dense<0.000000e+00> : vector<1x8xf32>
    %96 = tpu.matmul %94, %95, %cst_39 {dimension_numbers = #tpu.dot_dimension_numbers<[1], [0], [0], [1], [0, 0, 1, 1], [], []>} : vector<1x8xf32>, vector<8x8xf32>, vector<1x8xf32> -> vector<1x8xf32>
    %97 = arith.truncf %96 : vector<1x8xf32> to vector<1x8xbf16>
    %c3 = arith.constant 3 : index
    %c0_40 = arith.constant 0 : index
    %c0_41 = arith.constant 0 : index
    %98 = vector.load %arg6[%c3, %c0_40, %c0_41] : memref<4x8x32xbf16, #tpu.memory_space<vmem>>, vector<1x8x32xbf16>
    %99 = vector.shape_cast %98 : vector<1x8x32xbf16> to vector<8x32xbf16>
    %cst_42 = arith.constant dense<0.000000e+00> : vector<1x32xf32>
    %100 = tpu.matmul %97, %99, %cst_42 {dimension_numbers = #tpu.dot_dimension_numbers<[1], [0], [0], [1], [0, 0, 1, 1], [], []>} : vector<1x8xbf16>, vector<8x32xbf16>, vector<1x32xf32> -> vector<1x32xf32>
    %101 = arith.addf %80, %100 : vector<1x32xf32>
    %102 = vector.extract_strided_slice %1 {offsets = [0, 0], sizes = [1, 32], strides = [1, 1]} : vector<8x32xf32> to vector<1x32xf32>
    %103 = arith.addf %102, %101 : vector<1x32xf32>
    %c0_43 = arith.constant 0 : index
    %c0_44 = arith.constant 0 : index
    %104 = vector.load %arg8[%c0_43, %c0_44] : memref<1x32xf32, #tpu.memory_space<vmem>>, vector<1x32xf32>
    %c0_45 = arith.constant 0 : index
    %c0_46 = arith.constant 0 : index
    %105 = vector.load %arg9[%c0_45, %c0_46] : memref<1x32xf32, #tpu.memory_space<vmem>>, vector<1x32xf32>
    %cst_47 = arith.constant dense<0.000000e+00> : vector<1xf32>
    %106 = vector.multi_reduction <add>, %103, %cst_47 [1] : vector<1x32xf32> to vector<1xf32>
    %107 = vector.shape_cast %106 : vector<1xf32> to vector<1x1xf32>
    %cst_48 = arith.constant 3.200000e+01 : f32
    %108 = vector.broadcast %cst_48 : f32 to vector<1x1xf32>
    %109 = arith.divf %107, %108 : vector<1x1xf32>
    %110 = vector.broadcast %109 : vector<1x1xf32> to vector<1x32xf32>
    %111 = arith.subf %103, %110 : vector<1x32xf32>
    %112 = arith.mulf %111, %111 : vector<1x32xf32>
    %cst_49 = arith.constant dense<0.000000e+00> : vector<1xf32>
    %113 = vector.multi_reduction <add>, %112, %cst_49 [1] : vector<1x32xf32> to vector<1xf32>
    %114 = vector.shape_cast %113 : vector<1xf32> to vector<1x1xf32>
    %cst_50 = arith.constant 3.200000e+01 : f32
    %115 = vector.broadcast %cst_50 : f32 to vector<1x1xf32>
    %116 = arith.divf %114, %115 : vector<1x1xf32>
    %117 = vector.broadcast %109 : vector<1x1xf32> to vector<1x32xf32>
    %118 = arith.subf %103, %117 : vector<1x32xf32>
    %cst_51 = arith.constant 9.99999996E-13 : f32
    %119 = vector.broadcast %cst_51 : f32 to vector<1x1xf32>
    %120 = arith.addf %116, %119 : vector<1x1xf32>
    %121 = math.rsqrt %120 : vector<1x1xf32>
    %122 = vector.broadcast %121 : vector<1x1xf32> to vector<1x32xf32>
    %123 = arith.mulf %118, %122 : vector<1x32xf32>
    %124 = arith.mulf %123, %104 : vector<1x32xf32>
    %125 = arith.addf %124, %105 : vector<1x32xf32>
    %126 = arith.truncf %125 : vector<1x32xf32> to vector<1x32xbf16>
    %c0_52 = arith.constant 0 : index
    %c0_53 = arith.constant 0 : index
    %127 = vector.load %arg10[%c0_52, %c0_53] : memref<32x64xbf16, #tpu.memory_space<vmem>>, vector<32x64xbf16>
    %cst_54 = arith.constant dense<0.000000e+00> : vector<1x64xf32>
    %128 = tpu.matmul %126, %127, %cst_54 {dimension_numbers = #tpu.dot_dimension_numbers<[1], [0], [0], [1], [0, 0, 1, 1], [], []>} : vector<1x32xbf16>, vector<32x64xbf16>, vector<1x64xf32> -> vector<1x64xf32>
    %c0_55 = arith.constant 0 : index
    %c0_56 = arith.constant 0 : index
    %129 = vector.load %arg11[%c0_55, %c0_56] : memref<1x64xf32, #tpu.memory_space<vmem>>, vector<1x64xf32>
    %130 = arith.addf %128, %129 : vector<1x64xf32>
    %131 = arith.mulf %130, %130 : vector<1x64xf32>
    %132 = arith.mulf %130, %131 : vector<1x64xf32>
    %cst_57 = arith.constant 4.471500e-02 : f32
    %133 = vector.broadcast %cst_57 : f32 to vector<1x64xf32>
    %134 = arith.mulf %133, %132 : vector<1x64xf32>
    %135 = arith.addf %130, %134 : vector<1x64xf32>
    %cst_58 = arith.constant 0.797884583 : f32
    %136 = vector.broadcast %cst_58 : f32 to vector<1x64xf32>
    %137 = arith.mulf %136, %135 : vector<1x64xf32>
    %138 = math.tanh %137 : vector<1x64xf32>
    %cst_59 = arith.constant 1.000000e+00 : f32
    %139 = vector.broadcast %cst_59 : f32 to vector<1x64xf32>
    %140 = arith.addf %139, %138 : vector<1x64xf32>
    %cst_60 = arith.constant 5.000000e-01 : f32
    %141 = vector.broadcast %cst_60 : f32 to vector<1x64xf32>
    %142 = arith.mulf %141, %140 : vector<1x64xf32>
    %143 = arith.mulf %130, %142 : vector<1x64xf32>
    %144 = arith.truncf %143 : vector<1x64xf32> to vector<1x64xbf16>
    %c0_61 = arith.constant 0 : index
    %c0_62 = arith.constant 0 : index
    %145 = vector.load %arg12[%c0_61, %c0_62] : memref<64x32xbf16, #tpu.memory_space<vmem>>, vector<64x32xbf16>
    %cst_63 = arith.constant dense<0.000000e+00> : vector<1x32xf32>
    %146 = tpu.matmul %144, %145, %cst_63 {dimension_numbers = #tpu.dot_dimension_numbers<[1], [0], [0], [1], [0, 0, 1, 1], [], []>} : vector<1x64xbf16>, vector<64x32xbf16>, vector<1x32xf32> -> vector<1x32xf32>
    %c0_64 = arith.constant 0 : index
    %c0_65 = arith.constant 0 : index
    %147 = vector.load %arg13[%c0_64, %c0_65] : memref<1x32xf32, #tpu.memory_space<vmem>>, vector<1x32xf32>
    %148 = arith.addf %146, %147 : vector<1x32xf32>
    %149 = arith.addf %125, %148 : vector<1x32xf32>
    %c0_66 = arith.constant 0 : index
    %c0_67 = arith.constant 0 : index
    %150 = vector.load %arg14[%c0_66, %c0_67] : memref<1x32xf32, #tpu.memory_space<vmem>>, vector<1x32xf32>
    %c0_68 = arith.constant 0 : index
    %c0_69 = arith.constant 0 : index
    %151 = vector.load %arg15[%c0_68, %c0_69] : memref<1x32xf32, #tpu.memory_space<vmem>>, vector<1x32xf32>
    %cst_70 = arith.constant dense<0.000000e+00> : vector<1xf32>
    %152 = vector.multi_reduction <add>, %149, %cst_70 [1] : vector<1x32xf32> to vector<1xf32>
    %153 = vector.shape_cast %152 : vector<1xf32> to vector<1x1xf32>
    %cst_71 = arith.constant 3.200000e+01 : f32
    %154 = vector.broadcast %cst_71 : f32 to vector<1x1xf32>
    %155 = arith.divf %153, %154 : vector<1x1xf32>
    %156 = vector.broadcast %155 : vector<1x1xf32> to vector<1x32xf32>
    %157 = arith.subf %149, %156 : vector<1x32xf32>
    %158 = arith.mulf %157, %157 : vector<1x32xf32>
    %cst_72 = arith.constant dense<0.000000e+00> : vector<1xf32>
    %159 = vector.multi_reduction <add>, %158, %cst_72 [1] : vector<1x32xf32> to vector<1xf32>
    %160 = vector.shape_cast %159 : vector<1xf32> to vector<1x1xf32>
    %cst_73 = arith.constant 3.200000e+01 : f32
    %161 = vector.broadcast %cst_73 : f32 to vector<1x1xf32>
    %162 = arith.divf %160, %161 : vector<1x1xf32>
    %163 = vector.broadcast %155 : vector<1x1xf32> to vector<1x32xf32>
    %164 = arith.subf %149, %163 : vector<1x32xf32>
    %cst_74 = arith.constant 9.99999996E-13 : f32
    %165 = vector.broadcast %cst_74 : f32 to vector<1x1xf32>
    %166 = arith.addf %162, %165 : vector<1x1xf32>
    %167 = math.rsqrt %166 : vector<1x1xf32>
    %168 = vector.broadcast %167 : vector<1x1xf32> to vector<1x32xf32>
    %169 = arith.mulf %164, %168 : vector<1x32xf32>
    %170 = arith.mulf %169, %150 : vector<1x32xf32>
    %171 = arith.addf %170, %151 : vector<1x32xf32>
    %172 = arith.truncf %171 : vector<1x32xf32> to vector<1x32xbf16>
    %c0_75 = arith.constant 0 : index
    %c0_76 = arith.constant 0 : index
    %173 = vector.load %arg16[%c0_75, %c0_76] : memref<32x128xbf16, #tpu.memory_space<vmem>>, vector<32x128xbf16>
    %cst_77 = arith.constant dense<0.000000e+00> : vector<1x128xf32>
    %174 = tpu.matmul %172, %173, %cst_77 {dimension_numbers = #tpu.dot_dimension_numbers<[1], [0], [0], [1], [0, 0, 1, 1], [], []>} : vector<1x32xbf16>, vector<32x128xbf16>, vector<1x128xf32> -> vector<1x128xf32>
    %c0_78 = arith.constant 0 : index
    %c0_79 = arith.constant 0 : index
    %175 = vector.load %arg17[%c0_78, %c0_79] : memref<1x128xf32, #tpu.memory_space<vmem>>, vector<1x128xf32>
    %176 = arith.addf %174, %175 : vector<1x128xf32>
    %c0_80 = arith.constant 0 : index
    %c0_81 = arith.constant 0 : index
    %c0_82 = arith.constant 0 : index
    %177 = vector.load %arg18[%c0_80, %c0_81, %c0_82] : memref<1x1x128xf32, #tpu.memory_space<vmem>>, vector<1x1x128xf32>
    %178 = vector.shape_cast %177 : vector<1x1x128xf32> to vector<1x128xf32>
    %179 = vector.shape_cast %176 : vector<1x128xf32> to vector<1x1x128xf32>
    tpu.vector_store %arg18[%c0_80, %c0_81, %c0_82], %179 {strides = array<i32>} : memref<1x1x128xf32, #tpu.memory_space<vmem>>, vector<1x1x128xf32>,
    return
  }
  func.func @transform_0(%arg0: i32) -> (i32, i32, i32) {
    %c0_i32 = arith.constant 0 : i32
    %c0_i32_0 = arith.constant 0 : i32
    %c0_i32_1 = arith.constant 0 : i32
    return %arg0, %c0_i32, %c0_i32_0 : i32, i32, i32
  }
  func.func @transform_1(%arg0: i32) -> (i32, i32) {
    %c0_i32 = arith.constant 0 : i32
    %c0_i32_0 = arith.constant 0 : i32
    %c0_i32_1 = arith.constant 0 : i32
    return %c0_i32, %c0_i32_0 : i32, i32
  }
  func.func @transform_2(%arg0: i32) -> (i32, i32) {
    %c0_i32 = arith.constant 0 : i32
    %c0_i32_0 = arith.constant 0 : i32
    %c0_i32_1 = arith.constant 0 : i32
    return %c0_i32, %c0_i32_0 : i32, i32
  }
  func.func @transform_3(%arg0: i32) -> (i32, i32) {
    %c0_i32 = arith.constant 0 : i32
    %c0_i32_0 = arith.constant 0 : i32
    %c0_i32_1 = arith.constant 0 : i32
    return %c0_i32, %c0_i32_0 : i32, i32
  }
  func.func @transform_4(%arg0: i32) -> (i32, i32) {
    %c0_i32 = arith.constant 0 : i32
    %c0_i32_0 = arith.constant 0 : i32
    %c0_i32_1 = arith.constant 0 : i32
    return %c0_i32, %c0_i32_0 : i32, i32
  }
  func.func @transform_5(%arg0: i32) -> (i32, i32, i32) {
    %c0_i32 = arith.constant 0 : i32
    %c0_i32_0 = arith.constant 0 : i32
    %c0_i32_1 = arith.constant 0 : i32
    %c0_i32_2 = arith.constant 0 : i32
    return %c0_i32, %c0_i32_0, %c0_i32_1 : i32, i32, i32
  }
  func.func @transform_6(%arg0: i32) -> (i32, i32) {
    %c0_i32 = arith.constant 0 : i32
    %c0_i32_0 = arith.constant 0 : i32
    %c0_i32_1 = arith.constant 0 : i32
    return %c0_i32, %c0_i32_0 : i32, i32
  }
  func.func @transform_7(%arg0: i32) -> (i32, i32) {
    %c0_i32 = arith.constant 0 : i32
    %c0_i32_0 = arith.constant 0 : i32
    %c0_i32_1 = arith.constant 0 : i32
    return %c0_i32, %c0_i32_0 : i32, i32
  }
  func.func @transform_8(%arg0: i32) -> (i32, i32) {
    %c0_i32 = arith.constant 0 : i32
    %c0_i32_0 = arith.constant 0 : i32
    %c0_i32_1 = arith.constant 0 : i32
    return %c0_i32, %c0_i32_0 : i32, i32
  }
  func.func @transform_9(%arg0: i32) -> (i32, i32) {
    %c0_i32 = arith.constant 0 : i32
    %c0_i32_0 = arith.constant 0 : i32
    %c0_i32_1 = arith.constant 0 : i32
    return %c0_i32, %c0_i32_0 : i32, i32
  }
  func.func @transform_10(%arg0: i32) -> (i32, i32) {
    %c0_i32 = arith.constant 0 : i32
    %c0_i32_0 = arith.constant 0 : i32
    %c0_i32_1 = arith.constant 0 : i32
    return %c0_i32, %c0_i32_0 : i32, i32
  }
  func.func @transform_11(%arg0: i32) -> (i32, i32) {
    %c0_i32 = arith.constant 0 : i32
    %c0_i32_0 = arith.constant 0 : i32
    %c0_i32_1 = arith.constant 0 : i32
    return %c0_i32, %c0_i32_0 : i32, i32
  }
  func.func @transform_12(%arg0: i32) -> (i32, i32) {
    %c0_i32 = arith.constant 0 : i32
    %c0_i32_0 = arith.constant 0 : i32
    %c0_i32_1 = arith.constant 0 : i32
    return %c0_i32, %c0_i32_0 : i32, i32
  }
  func.func @transform_13(%arg0: i32) -> (i32, i32) {
    %c0_i32 = arith.constant 0 : i32
    %c0_i32_0 = arith.constant 0 : i32
    %c0_i32_1 = arith.constant 0 : i32
    return %c0_i32, %c0_i32_0 : i32, i32
  }
  func.func @transform_14(%arg0: i32) -> (i32, i32) {
    %c0_i32 = arith.constant 0 : i32
    %c0_i32_0 = arith.constant 0 : i32
    %c0_i32_1 = arith.constant 0 : i32
    return %c0_i32, %c0_i32_0 : i32, i32
  }
  func.func @transform_15(%arg0: i32) -> (i32, i32) {
    %c0_i32 = arith.constant 0 : i32
    %c0_i32_0 = arith.constant 0 : i32
    %c0_i32_1 = arith.constant 0 : i32
    return %c0_i32, %c0_i32_0 : i32, i32
  }
  func.func @transform_16(%arg0: i32) -> (i32, i32) {
    %c0_i32 = arith.constant 0 : i32
    %c0_i32_0 = arith.constant 0 : i32
    %c0_i32_1 = arith.constant 0 : i32
    return %c0_i32, %c0_i32_0 : i32, i32
  }
  func.func @transform_17(%arg0: i32) -> (i32, i32, i32) {
    %c0_i32 = arith.constant 0 : i32
    %c0_i32_0 = arith.constant 0 : i32
    %c0_i32_1 = arith.constant 0 : i32
    return %arg0, %c0_i32, %c0_i32_0 : i32, i32, i32
  }
}

</mosaic_0001>

<llo_original>
// kernel: tpu_custom_call.1
$region0: #{tpu_custom_call.1}
  #allocation0 [shape = 'u32[]', space=smem, size = 0x4, offset = 0x4, fixed_abs, tag = 'smem constant byte address 0x4 - core index']
  #allocation1 [shape = 'u32[72,128]{1,0:T(1,128)}', space=vmem, size = 0x9000, scoped, tag = 'internal scratch']
  %s0 = inlined_call_operand.vmem [shape: f32[2,8,32], index: 0, kind: input, shape index: {}]
  %s1 = inlined_call_operand.vmem [shape: bf16[32,32], index: 1, kind: input, shape index: {}]
  %s2 = inlined_call_operand.vmem [shape: f32[1,32], index: 2, kind: input, shape index: {}]
  %s3 = inlined_call_operand.vmem [shape: bf16[32,64], index: 3, kind: input, shape index: {}]
  %s4 = inlined_call_operand.vmem [shape: f32[1,64], index: 4, kind: input, shape index: {}]
  %s5 = inlined_call_operand.hbm [shape: bf16[4,8,32], index: 5, kind: input, shape index: {}]
  %s6 = inlined_call_operand.vmem [shape: f32[1,32], index: 6, kind: input, shape index: {}]
  %s7 = inlined_call_operand.vmem [shape: f32[1,32], index: 7, kind: input, shape index: {}]
  %s8 = inlined_call_operand.vmem [shape: f32[1,32], index: 8, kind: input, shape index: {}]
  %s9 = inlined_call_operand.hbm [shape: bf16[32,64], index: 9, kind: input, shape index: {}]
  %s10 = inlined_call_operand.vmem [shape: f32[1,64], index: 10, kind: input, shape index: {}]
  %s11 = inlined_call_operand.vmem [shape: bf16[64,32], index: 11, kind: input, shape index: {}]
  %s12 = inlined_call_operand.vmem [shape: f32[1,32], index: 12, kind: input, shape index: {}]
  %s13 = inlined_call_operand.vmem [shape: f32[1,32], index: 13, kind: input, shape index: {}]
  %s14 = inlined_call_operand.vmem [shape: f32[1,32], index: 14, kind: input, shape index: {}]
  %s15 = inlined_call_operand.hbm [shape: bf16[32,128], index: 15, kind: input, shape index: {}]
  %s16 = inlined_call_operand.vmem [shape: f32[1,128], index: 16, kind: input, shape index: {}]
  %s17 = inlined_call_operand.hbm [shape: f32[2,1,128], index: 17, kind: output, shape index: {}]
  %s18 = sld [smem:[#allocation0]]
  $region113: #{tpu_custom_call.1} parent=0
    _
  %s20 = ssub.s32 1, %s18
  %s21 = scalar_select 0, %s20, %s18
  $region1: #{tpu_custom_call.1} parent=0
    #allocation2 [shape = 'u8[8192]{0}', space=vmem, size = 0x2000, scoped, tag = 'input window, operand 5, single buffered']
    #allocation3 [shape = 's32[2]{0}', space=sflag, size = 0x8, scoped, tag = 'scoped memory for tpu_custom_call.1']
    #allocation4 [shape = 's32[2]{0}', space=sflag, size = 0x8, scoped, tag = 'scoped memory for tpu_custom_call.1']
    #allocation5 [shape = 'u8[8192]{0}', space=vmem, size = 0x2000, scoped, tag = 'input window, operand 9, single buffered']
    #allocation6 [shape = 's32[1]{0}', space=sflag, size = 0x4, scoped, tag = 'scoped memory for tpu_custom_call.1']
    #allocation7 [shape = 'u8[8192]{0}', space=vmem, size = 0x2000, scoped, tag = 'input window, operand 15, single buffered']
    #allocation8 [shape = 'u8[1024]{0}', space=vmem, size = 0x400, scoped, tag = 'output window, operand 0']
    %22 = vsyncpa [#allocation3], 0
    %23 = vsyncpa [#allocation6], 0
    %24 = vsyncpa [#allocation4], 0
    %s25 = scalar_lea.sflag [#allocation4], 1
    %26 = vsyncpa %s25, 0
    loop: start=0, step=1, limit=4
    $region2: #{tpu_custom_call.1} parent=1 // loop_pre_header
      _
    $region3: #{tpu_custom_call.1} parent=1 // loop_header
      %s28 = sphi 0, %s32
      %p29 = scmp.ge.s32.totalorder %s28, 4
      %s38 = sphi 0, %s40
      %s41 = sphi 0, %s38
      %s42 = sphi 0, %s41
      %s58 = sphi 0, %s42
      %s62 = sphi 0, %s62
      %s64 = sphi 0, %s62
      %s65 = sphi 0, %s64
      %s79 = sphi 0, %s65
      %s83 = sphi 0, %s83
      %s85 = sphi 0, %s83
      %s86 = sphi 0, %s85
      %s100 = sphi 0, %s86
      %s104 = sphi 0, %s104
      %s106 = sphi 0, %s104
      %s107 = sphi 0, %s106
      %s121 = sphi 0, %s107
      %s125 = sphi 0, %s125
      %s127 = sphi 0, %s125
      %s128 = sphi 0, %s127
      %s142 = sphi 0, %s128
      %s146 = sphi 0, %s146
      %s148 = sphi 0, %s146
      %s149 = sphi 0, %s148
      %s163 = sphi 0, %s149
      %s167 = sphi 0, %s167
      %s169 = sphi 0, %s167
      %s170 = sphi 0, %s169
      %s184 = sphi 0, %s170
      %s188 = sphi 0, %s188
      %s190 = sphi 0, %s188
      %s191 = sphi 0, %s190
      %s205 = sphi 0, %s191
      %s209 = sphi 0, %s209
      %s211 = sphi 0, %s209
      %s212 = sphi 0, %s211
      %s226 = sphi 0, %s212
      %s230 = sphi 0, %s230
      %s232 = sphi 0, %s230
      %s233 = sphi 0, %s232
      %s247 = sphi 0, %s233
      %s251 = sphi 0, %s251
      %s253 = sphi 0, %s251
      %s254 = sphi 0, %s253
      %s268 = sphi 0, %s254
      %s272 = sphi 0, %s272
      %s274 = sphi 0, %s272
      %s275 = sphi 0, %s274
      %s289 = sphi 0, %s275
      %s293 = sphi 0, %s293
      %s295 = sphi 0, %s293
      %s296 = sphi 0, %s295
      %s310 = sphi 0, %s296
      %s314 = sphi 0, %s314
      %s316 = sphi 0, %s314
      %s317 = sphi 0, %s316
      %s331 = sphi 0, %s317
      %s335 = sphi 0, %s335
      %s337 = sphi 0, %s335
      %s338 = sphi 0, %s337
      %s352 = sphi 0, %s338
      %s356 = sphi 0, %s356
      %s358 = sphi 0, %s356
      %s359 = sphi 0, %s358
      %s373 = sphi 0, %s359
      %s377 = sphi 0, %s377
      %s379 = sphi 0, %s377
      %s380 = sphi 0, %s379
      %s394 = sphi 0, %s380
      %s400 = sphi 0, %s402
      %s403 = sphi 0, %s400
      %s404 = sphi 0, %s403
      %s420 = sphi 0, %s404
    $region4: #{tpu_custom_call.1} parent=1 // loop_header_branch
      %31 = sbr.rel (%p29) target = $region8
    $region5: #{tpu_custom_call.1} parent=1 // loop_body
      %s33 = ssub.s32 %s28, 1
      %s34 = ssub.s32 %s28, 2
      %s35 = sadd.s32 %s28, 1
      %s36 = ssub.s32 %s28, %s35
      %p37 = scmp.eq.s32.totalorder %s36, 0
      %s39 = sadd.s32 %s38, 1
      %s40 = scalar_select %p37, %s38, %s39
      %p43 = pneg %p37
      %p44 = scmp.eq.s32.totalorder %s28, 1
      %p45 = por %p43, %p44
      %p46 = scmp.ne.s32.totalorder %s38, %s41
      %p47 = scmp.eq.s32.totalorder %s28, 0
      %p48 = por %p46, %p47
      %p49 = scmp.ne.s32.totalorder %s38, %s41
      %p50 = scmp.eq.s32.totalorder %s33, 1
      %p51 = por %p49, %p50
      %p52 = scmp.ne.s32.totalorder %s41, %s42
      %p53 = scmp.eq.s32.totalorder %s33, 0
      %p54 = por %p52, %p53
      %p55 = scmp.ne.s32.totalorder %s41, %s42
      %p56 = scmp.eq.s32.totalorder %s34, 1
      %p57 = por %p55, %p56
      %p59 = scmp.ne.s32.totalorder %s42, %s58
      %p60 = scmp.eq.s32.totalorder %s34, 0
      %p61 = por %p59, %p60
      %s63 = sadd.s32 %s62, 1
      %p66 = scmp.eq.s32.totalorder %s28, 1
      %p67 = scmp.ne.s32.totalorder %s62, %s64
      %p68 = scmp.eq.s32.totalorder %s28, 0
      %p69 = por %p67, %p68
      %p70 = scmp.ne.s32.totalorder %s62, %s64
      %p71 = scmp.eq.s32.totalorder %s33, 1
      %p72 = por %p70, %p71
      %p73 = scmp.ne.s32.totalorder %s64, %s65
      %p74 = scmp.eq.s32.totalorder %s33, 0
      %p75 = por %p73, %p74
      %p76 = scmp.ne.s32.totalorder %s64, %s65
      %p77 = scmp.eq.s32.totalorder %s34, 1
      %p78 = por %p76, %p77
      %p80 = scmp.ne.s32.totalorder %s65, %s79
      %p81 = scmp.eq.s32.totalorder %s34, 0
      %p82 = por %p80, %p81
      %s84 = sadd.s32 %s83, 1
      %p87 = scmp.eq.s32.totalorder %s28, 1
      %p88 = scmp.ne.s32.totalorder %s83, %s85
      %p89 = scmp.eq.s32.totalorder %s28, 0
      %p90 = por %p88, %p89
      %p91 = scmp.ne.s32.totalorder %s83, %s85
      %p92 = scmp.eq.s32.totalorder %s33, 1
      %p93 = por %p91, %p92
      %p94 = scmp.ne.s32.totalorder %s85, %s86
      %p95 = scmp.eq.s32.totalorder %s33, 0
      %p96 = por %p94, %p95
      %p97 = scmp.ne.s32.totalorder %s85, %s86
      %p98 = scmp.eq.s32.totalorder %s34, 1
      %p99 = por %p97, %p98
      %p101 = scmp.ne.s32.totalorder %s86, %s100
      %p102 = scmp.eq.s32.totalorder %s34, 0
      %p103 = por %p101, %p102
      %s105 = sadd.s32 %s104, 1
      %p108 = scmp.eq.s32.totalorder %s28, 1
      %p109 = scmp.ne.s32.totalorder %s104, %s106
      %p110 = scmp.eq.s32.totalorder %s28, 0
      %p111 = por %p109, %p110
      %p112 = scmp.ne.s32.totalorder %s104, %s106
      %p113 = scmp.eq.s32.totalorder %s33, 1
      %p114 = por %p112, %p113
      %p115 = scmp.ne.s32.totalorder %s106, %s107
      %p116 = scmp.eq.s32.totalorder %s33, 0
      %p117 = por %p115, %p116
      %p118 = scmp.ne.s32.totalorder %s106, %s107
      %p119 = scmp.eq.s32.totalorder %s34, 1
      %p120 = por %p118, %p119
      %p122 = scmp.ne.s32.totalorder %s107, %s121
      %p123 = scmp.eq.s32.totalorder %s34, 0
      %p124 = por %p122, %p123
      %s126 = sadd.s32 %s125, 1
      %p129 = scmp.eq.s32.totalorder %s28, 1
      %p130 = scmp.ne.s32.totalorder %s125, %s127
      %p131 = scmp.eq.s32.totalorder %s28, 0
      %p132 = por %p130, %p131
      %p133 = scmp.ne.s32.totalorder %s125, %s127
      %p134 = scmp.eq.s32.totalorder %s33, 1
      %p135 = por %p133, %p134
      %p136 = scmp.ne.s32.totalorder %s127, %s128
      %p137 = scmp.eq.s32.totalorder %s33, 0
      %p138 = por %p136, %p137
      %p139 = scmp.ne.s32.totalorder %s127, %s128
      %p140 = scmp.eq.s32.totalorder %s34, 1
      %p141 = por %p139, %p140
      %p143 = scmp.ne.s32.totalorder %s128, %s142
      %p144 = scmp.eq.s32.totalorder %s34, 0
      %p145 = por %p143, %p144
      %s147 = sadd.s32 %s146, 1
      %p150 = scmp.eq.s32.totalorder %s28, 1
      %p151 = scmp.ne.s32.totalorder %s146, %s148
      %p152 = scmp.eq.s32.totalorder %s28, 0
      %p153 = por %p151, %p152
      %p154 = scmp.ne.s32.totalorder %s146, %s148
      %p155 = scmp.eq.s32.totalorder %s33, 1
      %p156 = por %p154, %p155
      %p157 = scmp.ne.s32.totalorder %s148, %s149
      %p158 = scmp.eq.s32.totalorder %s33, 0
      %p159 = por %p157, %p158
      %p160 = scmp.ne.s32.totalorder %s148, %s149
      %p161 = scmp.eq.s32.totalorder %s34, 1
      %p162 = por %p160, %p161
      %p164 = scmp.ne.s32.totalorder %s149, %s163
      %p165 = scmp.eq.s32.totalorder %s34, 0
      %p166 = por %p164, %p165
      %s168 = sadd.s32 %s167, 1
      %p171 = scmp.eq.s32.totalorder %s28, 1
      %p172 = scmp.ne.s32.totalorder %s167, %s169
      %p173 = scmp.eq.s32.totalorder %s28, 0
      %p174 = por %p172, %p173
      %p175 = scmp.ne.s32.totalorder %s167, %s169
      %p176 = scmp.eq.s32.totalorder %s33, 1
      %p177 = por %p175, %p176
      %p178 = scmp.ne.s32.totalorder %s169, %s170
      %p179 = scmp.eq.s32.totalorder %s33, 0
      %p180 = por %p178, %p179
      %p181 = scmp.ne.s32.totalorder %s169, %s170
      %p182 = scmp.eq.s32.totalorder %s34, 1
      %p183 = por %p181, %p182
      %p185 = scmp.ne.s32.totalorder %s170, %s184
      %p186 = scmp.eq.s32.totalorder %s34, 0
      %p187 = por %p185, %p186
      %s189 = sadd.s32 %s188, 1
      %p192 = scmp.eq.s32.totalorder %s28, 1
      %p193 = scmp.ne.s32.totalorder %s188, %s190
      %p194 = scmp.eq.s32.totalorder %s28, 0
      %p195 = por %p193, %p194
      %p196 = scmp.ne.s32.totalorder %s188, %s190
      %p197 = scmp.eq.s32.totalorder %s33, 1
      %p198 = por %p196, %p197
      %p199 = scmp.ne.s32.totalorder %s190, %s191
      %p200 = scmp.eq.s32.totalorder %s33, 0
      %p201 = por %p199, %p200
      %p202 = scmp.ne.s32.totalorder %s190, %s191
      %p203 = scmp.eq.s32.totalorder %s34, 1
      %p204 = por %p202, %p203
      %p206 = scmp.ne.s32.totalorder %s191, %s205
      %p207 = scmp.eq.s32.totalorder %s34, 0
      %p208 = por %p206, %p207
      %s210 = sadd.s32 %s209, 1
      %p213 = scmp.eq.s32.totalorder %s28, 1
      %p214 = scmp.ne.s32.totalorder %s209, %s211
      %p215 = scmp.eq.s32.totalorder %s28, 0
      %p216 = por %p214, %p215
      %p217 = scmp.ne.s32.totalorder %s209, %s211
      %p218 = scmp.eq.s32.totalorder %s33, 1
      %p219 = por %p217, %p218
      %p220 = scmp.ne.s32.totalorder %s211, %s212
      %p221 = scmp.eq.s32.totalorder %s33, 0
      %p222 = por %p220, %p221
      %p223 = scmp.ne.s32.totalorder %s211, %s212
      %p224 = scmp.eq.s32.totalorder %s34, 1
      %p225 = por %p223, %p224
      %p227 = scmp.ne.s32.totalorder %s212, %s226
      %p228 = scmp.eq.s32.totalorder %s34, 0
      %p229 = por %p227, %p228
      %s231 = sadd.s32 %s230, 1
      %p234 = scmp.eq.s32.totalorder %s28, 1
      %p235 = scmp.ne.s32.totalorder %s230, %s232
      %p236 = scmp.eq.s32.totalorder %s28, 0
      %p237 = por %p235, %p236
      %p238 = scmp.ne.s32.totalorder %s230, %s232
      %p239 = scmp.eq.s32.totalorder %s33, 1
      %p240 = por %p238, %p239
      %p241 = scmp.ne.s32.totalorder %s232, %s233
      %p242 = scmp.eq.s32.totalorder %s33, 0
      %p243 = por %p241, %p242
      %p244 = scmp.ne.s32.totalorder %s232, %s233
      %p245 = scmp.eq.s32.totalorder %s34, 1
      %p246 = por %p244, %p245
      %p248 = scmp.ne.s32.totalorder %s233, %s247
      %p249 = scmp.eq.s32.totalorder %s34, 0
      %p250 = por %p248, %p249
      %s252 = sadd.s32 %s251, 1
      %p255 = scmp.eq.s32.totalorder %s28, 1
      %p256 = scmp.ne.s32.totalorder %s251, %s253
      %p257 = scmp.eq.s32.totalorder %s28, 0
      %p258 = por %p256, %p257
      %p259 = scmp.ne.s32.totalorder %s251, %s253
      %p260 = scmp.eq.s32.totalorder %s33, 1
      %p261 = por %p259, %p260
      %p262 = scmp.ne.s32.totalorder %s253, %s254
      %p263 = scmp.eq.s32.totalorder %s33, 0
      %p264 = por %p262, %p263
      %p265 = scmp.ne.s32.totalorder %s253, %s254
      %p266 = scmp.eq.s32.totalorder %s34, 1
      %p267 = por %p265, %p266
      %p269 = scmp.ne.s32.totalorder %s254, %s268
      %p270 = scmp.eq.s32.totalorder %s34, 0
      %p271 = por %p269, %p270
      %s273 = sadd.s32 %s272, 1
      %p276 = scmp.eq.s32.totalorder %s28, 1
      %p277 = scmp.ne.s32.totalorder %s272, %s274
      %p278 = scmp.eq.s32.totalorder %s28, 0
      %p279 = por %p277, %p278
      %p280 = scmp.ne.s32.totalorder %s272, %s274
      %p281 = scmp.eq.s32.totalorder %s33, 1
      %p282 = por %p280, %p281
      %p283 = scmp.ne.s32.totalorder %s274, %s275
      %p284 = scmp.eq.s32.totalorder %s33, 0
      %p285 = por %p283, %p284
      %p286 = scmp.ne.s32.totalorder %s274, %s275
      %p287 = scmp.eq.s32.totalorder %s34, 1
      %p288 = por %p286, %p287
      %p290 = scmp.ne.s32.totalorder %s275, %s289
      %p291 = scmp.eq.s32.totalorder %s34, 0
      %p292 = por %p290, %p291
      %s294 = sadd.s32 %s293, 1
      %p297 = scmp.eq.s32.totalorder %s28, 1
      %p298 = scmp.ne.s32.totalorder %s293, %s295
      %p299 = scmp.eq.s32.totalorder %s28, 0
      %p300 = por %p298, %p299
      %p301 = scmp.ne.s32.totalorder %s293, %s295
      %p302 = scmp.eq.s32.totalorder %s33, 1
      %p303 = por %p301, %p302
      %p304 = scmp.ne.s32.totalorder %s295, %s296
      %p305 = scmp.eq.s32.totalorder %s33, 0
      %p306 = por %p304, %p305
      %p307 = scmp.ne.s32.totalorder %s295, %s296
      %p308 = scmp.eq.s32.totalorder %s34, 1
      %p309 = por %p307, %p308
      %p311 = scmp.ne.s32.totalorder %s296, %s310
      %p312 = scmp.eq.s32.totalorder %s34, 0
      %p313 = por %p311, %p312
      %s315 = sadd.s32 %s314, 1
      %p318 = scmp.eq.s32.totalorder %s28, 1
      %p319 = scmp.ne.s32.totalorder %s314, %s316
      %p320 = scmp.eq.s32.totalorder %s28, 0
      %p321 = por %p319, %p320
      %p322 = scmp.ne.s32.totalorder %s314, %s316
      %p323 = scmp.eq.s32.totalorder %s33, 1
      %p324 = por %p322, %p323
      %p325 = scmp.ne.s32.totalorder %s316, %s317
      %p326 = scmp.eq.s32.totalorder %s33, 0
      %p327 = por %p325, %p326
      %p328 = scmp.ne.s32.totalorder %s316, %s317
      %p329 = scmp.eq.s32.totalorder %s34, 1
      %p330 = por %p328, %p329
      %p332 = scmp.ne.s32.totalorder %s317, %s331
      %p333 = scmp.eq.s32.totalorder %s34, 0
      %p334 = por %p332, %p333
      %s336 = sadd.s32 %s335, 1
      %p339 = scmp.eq.s32.totalorder %s28, 1
      %p340 = scmp.ne.s32.totalorder %s335, %s337
      %p341 = scmp.eq.s32.totalorder %s28, 0
      %p342 = por %p340, %p341
      %p343 = scmp.ne.s32.totalorder %s335, %s337
      %p344 = scmp.eq.s32.totalorder %s33, 1
      %p345 = por %p343, %p344
      %p346 = scmp.ne.s32.totalorder %s337, %s338
      %p347 = scmp.eq.s32.totalorder %s33, 0
      %p348 = por %p346, %p347
      %p349 = scmp.ne.s32.totalorder %s337, %s338
      %p350 = scmp.eq.s32.totalorder %s34, 1
      %p351 = por %p349, %p350
      %p353 = scmp.ne.s32.totalorder %s338, %s352
      %p354 = scmp.eq.s32.totalorder %s34, 0
      %p355 = por %p353, %p354
      %s357 = sadd.s32 %s356, 1
      %p360 = scmp.eq.s32.totalorder %s28, 1
      %p361 = scmp.ne.s32.totalorder %s356, %s358
      %p362 = scmp.eq.s32.totalorder %s28, 0
      %p363 = por %p361, %p362
      %p364 = scmp.ne.s32.totalorder %s356, %s358
      %p365 = scmp.eq.s32.totalorder %s33, 1
      %p366 = por %p364, %p365
      %p367 = scmp.ne.s32.totalorder %s358, %s359
      %p368 = scmp.eq.s32.totalorder %s33, 0
      %p369 = por %p367, %p368
      %p370 = scmp.ne.s32.totalorder %s358, %s359
      %p371 = scmp.eq.s32.totalorder %s34, 1
      %p372 = por %p370, %p371
      %p374 = scmp.ne.s32.totalorder %s359, %s373
      %p375 = scmp.eq.s32.totalorder %s34, 0
      %p376 = por %p374, %p375
      %s378 = sadd.s32 %s377, 1
      %p381 = scmp.eq.s32.totalorder %s28, 1
      %p382 = scmp.ne.s32.totalorder %s377, %s379
      %p383 = scmp.eq.s32.totalorder %s28, 0
      %p384 = por %p382, %p383
      %p385 = scmp.ne.s32.totalorder %s377, %s379
      %p386 = scmp.eq.s32.totalorder %s33, 1
      %p387 = por %p385, %p386
      %p388 = scmp.ne.s32.totalorder %s379, %s380
      %p389 = scmp.eq.s32.totalorder %s33, 0
      %p390 = por %p388, %p389
      %p391 = scmp.ne.s32.totalorder %s379, %s380
      %p392 = scmp.eq.s32.totalorder %s34, 1
      %p393 = por %p391, %p392
      %p395 = scmp.ne.s32.totalorder %s380, %s394
      %p396 = scmp.eq.s32.totalorder %s34, 0
      %p397 = por %p395, %p396
      %s398 = ssub.s32 %s28, %s35
      %p399 = scmp.eq.s32.totalorder %s398, 0
      %s401 = sadd.s32 %s400, 1
      %s402 = scalar_select %p399, %s400, %s401
      %p405 = pneg %p399
      %p406 = scmp.eq.s32.totalorder %s28, 1
      %p407 = por %p405, %p406
      %p408 = scmp.ne.s32.totalorder %s400, %s403
      %p409 = scmp.eq.s32.totalorder %s28, 0
      %p410 = por %p408, %p409
      %p411 = scmp.ne.s32.totalorder %s400, %s403
      %p412 = scmp.eq.s32.totalorder %s33, 1
      %p413 = por %p411, %p412
      %p414 = scmp.ne.s32.totalorder %s403, %s404
      %p415 = scmp.eq.s32.totalorder %s33, 0
      %p416 = por %p414, %p415
      %p417 = scmp.ne.s32.totalorder %s403, %s404
      %p418 = scmp.eq.s32.totalorder %s34, 1
      %p419 = por %p417, %p418
      %p421 = scmp.ne.s32.totalorder %s404, %s420
      %p422 = scmp.eq.s32.totalorder %s34, 0
      %p423 = por %p421, %p422
      %p424 = scmp.le.s32.totalorder 1, %s28
      %p425 = scmp.lt.s32.totalorder %s28, 3
      %p426 = pnand %p424, %p425
      %p427 = pneg %p426
      // Predicated region
      $region9: #{tpu_custom_call.1} parent=5 // pred_check
        _
      $region10: #{tpu_custom_call.1} parent=5 // pred_check_branch
        %429 = sbr.rel (%p426) target = $region12
      $region11: #{tpu_custom_call.1} parent=5 // pred_region
        %s430 = ssub.s32 %s28, 1
        // Predicated region
        $region13: #{tpu_custom_call.1} parent=11 // pred_check
          %p431 = pneg %p75
        $region14: #{tpu_custom_call.1} parent=11 // pred_check_branch
          %433 = sbr.rel (%p431) target = $region16
        $region15: #{tpu_custom_call.1} parent=11 // pred_region
          _
        $region16: #{tpu_custom_call.1} parent=11 // pred_fallthru
          _
        // Predicated region
        $region17: #{tpu_custom_call.1} parent=11 // pred_check
          %p434 = pneg %p96
        $region18: #{tpu_custom_call.1} parent=11 // pred_check_branch
          %436 = sbr.rel (%p434) target = $region20
        $region19: #{tpu_custom_call.1} parent=11 // pred_region
          _
        $region20: #{tpu_custom_call.1} parent=11 // pred_fallthru
          _
        // Predicated region
        $region21: #{tpu_custom_call.1} parent=11 // pred_check
          %p437 = pneg %p117
        $region22: #{tpu_custom_call.1} parent=11 // pred_check_branch
          %439 = sbr.rel (%p437) target = $region24
        $region23: #{tpu_custom_call.1} parent=11 // pred_region
          _
        $region24: #{tpu_custom_call.1} parent=11 // pred_fallthru
          _
        // Predicated region
        $region25: #{tpu_custom_call.1} parent=11 // pred_check
          %p440 = pneg %p138
        $region26: #{tpu_custom_call.1} parent=11 // pred_check_branch
          %442 = sbr.rel (%p440) target = $region28
        $region27: #{tpu_custom_call.1} parent=11 // pred_region
          _
        $region28: #{tpu_custom_call.1} parent=11 // pred_fallthru
          _
        // Predicated region
        $region29: #{tpu_custom_call.1} parent=11 // pred_check
          %p443 = pneg %p159
        $region30: #{tpu_custom_call.1} parent=11 // pred_check_branch
          %445 = sbr.rel (%p443) target = $region32
        $region31: #{tpu_custom_call.1} parent=11 // pred_region
          %447 = vsyncadd [#allocation3], 0
          %s448 = sshll.u32 %s5, 4
          %s449 = int_to_ptr.hbm [resolvable:$true] %s448
          %s450 = sshll.u32 [#allocation2], 4
          %s451 = int_to_ptr.vmem [resolvable:$true] %s450
          %456 = dma.hbm_to_vmem [thread:$0]  %s449, 256, %s451, [#allocation3], 64, 64, 4
        $region32: #{tpu_custom_call.1} parent=11 // pred_fallthru
          _
        // Predicated region
        $region33: #{tpu_custom_call.1} parent=11 // pred_check
          %p457 = pneg %p180
        $region34: #{tpu_custom_call.1} parent=11 // pred_check_branch
          %459 = sbr.rel (%p457) target = $region36
        $region35: #{tpu_custom_call.1} parent=11 // pred_region
          _
        $region36: #{tpu_custom_call.1} parent=11 // pred_fallthru
          _
        // Predicated region
        $region37: #{tpu_custom_call.1} parent=11 // pred_check
          %p460 = pneg %p201
        $region38: #{tpu_custom_call.1} parent=11 // pred_check_branch
          %462 = sbr.rel (%p460) target = $region40
        $region39: #{tpu_custom_call.1} parent=11 // pred_region
          _
        $region40: #{tpu_custom_call.1} parent=11 // pred_fallthru
          _
        // Predicated region
        $region41: #{tpu_custom_call.1} parent=11 // pred_check
          %p463 = pneg %p222
        $region42: #{tpu_custom_call.1} parent=11 // pred_check_branch
          %465 = sbr.rel (%p463) target = $region44
        $region43: #{tpu_custom_call.1} parent=11 // pred_region
          _
        $region44: #{tpu_custom_call.1} parent=11 // pred_fallthru
          _
        // Predicated region
        $region45: #{tpu_custom_call.1} parent=11 // pred_check
          %p466 = pneg %p243
        $region46: #{tpu_custom_call.1} parent=11 // pred_check_branch
          %468 = sbr.rel (%p466) target = $region48
        $region47: #{tpu_custom_call.1} parent=11 // pred_region
          %470 = vsyncadd [#allocation6], 0
          %s471 = sshll.u32 %s9, 4
          %s472 = int_to_ptr.hbm [resolvable:$true] %s471
          %s473 = sshll.u32 [#allocation5], 4
          %s474 = int_to_ptr.vmem [resolvable:$true] %s473
          %479 = dma.hbm_to_vmem [thread:$0]  %s472, 256, %s474, [#allocation6], 64, 64, 4
        $region48: #{tpu_custom_call.1} parent=11 // pred_fallthru
          _
        // Predicated region
        $region49: #{tpu_custom_call.1} parent=11 // pred_check
          %p480 = pneg %p264
        $region50: #{tpu_custom_call.1} parent=11 // pred_check_branch
          %482 = sbr.rel (%p480) target = $region52
        $region51: #{tpu_custom_call.1} parent=11 // pred_region
          _
        $region52: #{tpu_custom_call.1} parent=11 // pred_fallthru
          _
        // Predicated region
        $region53: #{tpu_custom_call.1} parent=11 // pred_check
          %p483 = pneg %p285
        $region54: #{tpu_custom_call.1} parent=11 // pred_check_branch
          %485 = sbr.rel (%p483) target = $region56
        $region55: #{tpu_custom_call.1} parent=11 // pred_region
          _
        $region56: #{tpu_custom_call.1} parent=11 // pred_fallthru
          _
        // Predicated region
        $region57: #{tpu_custom_call.1} parent=11 // pred_check
          %p486 = pneg %p306
        $region58: #{tpu_custom_call.1} parent=11 // pred_check_branch
          %488 = sbr.rel (%p486) target = $region60
        $region59: #{tpu_custom_call.1} parent=11 // pred_region
          _
        $region60: #{tpu_custom_call.1} parent=11 // pred_fallthru
          _
        // Predicated region
        $region61: #{tpu_custom_call.1} parent=11 // pred_check
          %p489 = pneg %p327
        $region62: #{tpu_custom_call.1} parent=11 // pred_check_branch
          %491 = sbr.rel (%p489) target = $region64
        $region63: #{tpu_custom_call.1} parent=11 // pred_region
          _
        $region64: #{tpu_custom_call.1} parent=11 // pred_fallthru
          _
        // Predicated region
        $region65: #{tpu_custom_call.1} parent=11 // pred_check
          %p492 = pneg %p348
        $region66: #{tpu_custom_call.1} parent=11 // pred_check_branch
          %494 = sbr.rel (%p492) target = $region68
        $region67: #{tpu_custom_call.1} parent=11 // pred_region
          _
        $region68: #{tpu_custom_call.1} parent=11 // pred_fallthru
          _
        // Predicated region
        $region69: #{tpu_custom_call.1} parent=11 // pred_check
          %p495 = pneg %p369
        $region70: #{tpu_custom_call.1} parent=11 // pred_check_branch
          %497 = sbr.rel (%p495) target = $region72
        $region71: #{tpu_custom_call.1} parent=11 // pred_region
          %499 = vsyncadd [#allocation6], 0
          %s500 = sshll.u32 %s15, 4
          %s501 = int_to_ptr.hbm [resolvable:$true] %s500
          %s502 = sshll.u32 [#allocation7], 4
          %s503 = int_to_ptr.vmem [resolvable:$true] %s502
          %508 = dma.hbm_to_vmem [thread:$0]  %s501, 256, %s503, [#allocation6], 64, 64, 4
        $region72: #{tpu_custom_call.1} parent=11 // pred_fallthru
          _
        // Predicated region
        $region73: #{tpu_custom_call.1} parent=11 // pred_check
          %p509 = pneg %p390
        $region74: #{tpu_custom_call.1} parent=11 // pred_check_branch
          %511 = sbr.rel (%p509) target = $region76
        $region75: #{tpu_custom_call.1} parent=11 // pred_region
          _
        $region76: #{tpu_custom_call.1} parent=11 // pred_fallthru
          _
      $region12: #{tpu_custom_call.1} parent=5 // pred_fallthru
        _
      %p512 = scmp.lt.s32.totalorder %s28, 2
      // Predicated region
      $region77: #{tpu_custom_call.1} parent=5 // pred_check
        %p513 = pneg %p512
      $region78: #{tpu_custom_call.1} parent=5 // pred_check_branch
        %515 = sbr.rel (%p513) target = $region80
      $region79: #{tpu_custom_call.1} parent=5 // pred_region
        // Predicated region
        $region81: #{tpu_custom_call.1} parent=79 // pred_check
          %p516 = pneg %p48
        $region82: #{tpu_custom_call.1} parent=79 // pred_check_branch
          %518 = sbr.rel (%p516) target = $region84
        $region83: #{tpu_custom_call.1} parent=79 // pred_region
          %p519 = scmp.lt.s32.totalorder %s28, 1
          %s520 = scalar_select %p519, %s28, 1
          %s521 = smul.addr %s520, 8
          %s522 = scalar_lea.vmem %s0, %s521
        $region84: #{tpu_custom_call.1} parent=79 // pred_fallthru
          _
      $region80: #{tpu_custom_call.1} parent=5 // pred_fallthru
        _
      %p523 = scmp.le.s32.totalorder 1, %s28
      %p524 = scmp.lt.s32.totalorder %s28, 3
      %p525 = pnand %p523, %p524
      %p526 = pneg %p525
      // Predicated region
      $region85: #{tpu_custom_call.1} parent=5 // pred_check
        _
      $region86: #{tpu_custom_call.1} parent=5 // pred_check_branch
        %528 = sbr.rel (%p525) target = $region88
      $region87: #{tpu_custom_call.1} parent=5 // pred_region
        %s529 = ssub.s32 %s28, 1
        // Predicated region
        $region89: #{tpu_custom_call.1} parent=87 // pred_check
          %p530 = pneg %p159
        $region90: #{tpu_custom_call.1} parent=87 // pred_check_branch
          %532 = sbr.rel (%p530) target = $region92
        $region91: #{tpu_custom_call.1} parent=87 // pred_region
          %534 = dma.done [#allocation3], 256
        $region92: #{tpu_custom_call.1} parent=87 // pred_fallthru
          _
        // Predicated region
        $region93: #{tpu_custom_call.1} parent=87 // pred_check
          %p535 = pneg %p243
        $region94: #{tpu_custom_call.1} parent=87 // pred_check_branch
          %537 = sbr.rel (%p535) target = $region96
        $region95: #{tpu_custom_call.1} parent=87 // pred_region
          %539 = dma.done [#allocation6], 256
        $region96: #{tpu_custom_call.1} parent=87 // pred_fallthru
          _
        // Predicated region
        $region97: #{tpu_custom_call.1} parent=87 // pred_check
          %p540 = pneg %p369
        $region98: #{tpu_custom_call.1} parent=87 // pred_check_branch
          %542 = sbr.rel (%p540) target = $region100
        $region99: #{tpu_custom_call.1} parent=87 // pred_region
          %544 = dma.done [#allocation6], 256
        $region100: #{tpu_custom_call.1} parent=87 // pred_fallthru
          _
        %p545 = scmp.lt.s32.totalorder %s33, 1
        %s546 = scalar_select %p545, %s33, 1
        %s547 = smul.addr %s546, 8
        %s548 = scalar_lea.vmem %s0, %s547
        %p549 = pneg %p54
        %p550 = pneg %p51
        %p551 = pneg %p75
        %p552 = pneg %p72
        %p553 = pneg %p96
        %p554 = pneg %p93
        %p555 = pneg %p117
        %p556 = pneg %p114
        %p557 = pneg %p138
        %p558 = pneg %p135
        %p559 = pneg %p159
        %p560 = pneg %p156
        %p561 = pneg %p180
        %p562 = pneg %p177
        %p563 = pneg %p201
        %p564 = pneg %p198
        %p565 = pneg %p222
        %p566 = pneg %p219
        %p567 = pneg %p243
        %p568 = pneg %p240
        %p569 = pneg %p264
        %p570 = pneg %p261
        %p571 = pneg %p285
        %p572 = pneg %p282
        %p573 = pneg %p306
        %p574 = pneg %p303
        %p575 = pneg %p327
        %p576 = pneg %p324
        %p577 = pneg %p348
        %p578 = pneg %p345
        %p579 = pneg %p369
        %p580 = pneg %p366
        %p581 = pneg %p390
        %p582 = pneg %p387
        %p583 = pneg %p416
        %p584 = pneg %p413
        %s585 = sand.u32 %s403, 1
        %s586 = scalar_lea.sflag [#allocation4], %s585
        %s587 = sand.u32 %s403, 1
        %s588 = scalar_lea.vmem [#allocation8], %s587
        %p589 = scmp.lt.s32.totalorder %s33, 1
        %s590 = scalar_select %p589, %s33, 1
        %s591 = smul.addr %s590, 8
        %s592 = scalar_lea.vmem %s0, %s591
        %v594 = vld [vmem:[%s592] sm:$0xff]
        %v595 = vpack.c.bf16 %v594, %v594
        %v596 = vld [vmem:[%s3] sm:$0xf]
        %v597 = vld [vmem:[%s3 + $0x4] sm:$0xf]
        %v598 = vld [vmem:[%s3 + $0x8] sm:$0xf]
        %v599 = vld [vmem:[%s3 + $0xc] sm:$0xf]
        %v600 = vld [vmem:[%s4] sm:$0x1]
        %v602 = vperm.slane %v600, 0
        %v608 = vunpack.c.l.b16 %v596
        %v609 = vunpack.c.l.b16 %v597
        %v610 = vunpack.c.l.b16 %v598
        %v611 = vunpack.c.l.b16 %v599
        %v612 = vpack.c.b16 %v609, %v608
        %v613 = vpack.c.b16 %v611, %v610
        %vm616 = vcmask 261120
        %v618 = vsel %vm616, %v595, 0
        %620 = vmatpush.bf16.msra.mxu0 0
        %621 = vmatpush.bf16.msra.mxu0 0
        %622 = vmatpush.bf16.msra.mxu0 0
        %623 = vmatpush.bf16.msra.mxu0 0
        %624 = vmatpush.bf16.msra.mxu0 0
        %625 = vmatpush.bf16.msra.mxu0 0
        %626 = vmatpush.bf16.msra.mxu0 %v613
        %627 = vmatpush.bf16.msra.mxu0 %v612
        %628 = vmatmul.bf16.gmra.mxu0 %v618
        %v629 = vpop.f32.mrf.mxu0
        %v630 = vadd.f32 %v602, %v629
        %v631 = vpop.f32.mrf.mxu0
        %632 = vdwg.mxu0
        %v633 = vld [vmem:[%s1] sm:$0xf]
        %v634 = vld [vmem:[%s1 + $0x4] sm:$0xf]
        %v635 = vld [vmem:[%s1 + $0x8] sm:$0xf]
        %v636 = vld [vmem:[%s1 + $0xc] sm:$0xf]
        %v637 = vld [vmem:[%s2] sm:$0x1]
        %v642 = vunpack.c.l.b16 %v633
        %v643 = vunpack.c.l.b16 %v634
        %v644 = vunpack.c.l.b16 %v635
        %v645 = vunpack.c.l.b16 %v636
        %v646 = vpack.c.b16 %v643, %v642
        %v647 = vpack.c.b16 %v645, %v644
        %650 = vmatpush.bf16.msra.mxu0 0
        %651 = vmatpush.bf16.msra.mxu0 0
        %652 = vmatpush.bf16.msra.mxu0 0
        %653 = vmatpush.bf16.msra.mxu0 0
        %654 = vmatpush.bf16.msra.mxu0 0
        %655 = vmatpush.bf16.msra.mxu0 0
        %656 = vmatpush.bf16.msra.mxu0 %v647
        %657 = vmatpush.bf16.msra.mxu0 %v646
        %658 = vmatmul.bf16.gmra.mxu0 %v618
        %v659 = vpop.f32.mrf.mxu0
        %v660 = vadd.f32 %v637, %v659
        %v661 = vpop.f32.mrf.mxu0
        %662 = vdwg.mxu0
        %v663 = vmul.f32 %v660, 0.35355338
        %v664 = vld [vmem:[%s6] sm:$0x1]
        %vm665 = vcmask 64512
        %v667 = vsel %vm665, %v663, 0
        %v670 = vsel %vm665, %v630, 0
        %672 = vmatpush.xpose.msra.mxu0 0.0
        %673 = vmatpush.xpose.msra.mxu0 0.0
        %674 = vmatpush.xpose.msra.mxu0 0.0
        %675 = vmatpush.xpose.msra.mxu0 0.0
        %676 = vmatpush.xpose.msra.mxu0 0.0
        %677 = vmatpush.xpose.msra.mxu0 0.0
        %678 = vmatpush.xpose.msra.mxu0 0.0
        %679 = vmatpush.xpose.msra.mxu0 0.0
        %680 = vmatpush.xpose.msra.mxu0 0.0
        %681 = vmatpush.xpose.msra.mxu0 0.0
        %682 = vmatpush.xpose.msra.mxu0 0.0
        %683 = vmatpush.xpose.msra.mxu0 0.0
        %684 = vmatpush.xpose.msra.mxu0 0.0
        %685 = vmatpush.xpose.msra.mxu0 0.0
        %686 = vmatpush.xpose.msra.mxu0 0.0
        %687 = vmatpush.xpose.msra.mxu0 %v670
        %688 = vmatmul.f32.gmra.mxu0 %v667
        %v689 = vpop.f32.mrf.mxu0
        %v690 = vadd.f32 0.0, %v689
        %691 = vdwg.mxu0
        %vm692 = vcmask 57344
        %v693 = vsel %vm692, %v690, -inf
        %694 = vmax.xlane.f32.xlu0 %v693
        %v695 = vpop.xlane.xlu0 %694
        %v696 = vsub.f32 %v690, %v695
        %v697 = vmul.f32 %v696, 1.442695
        %v698 = vpow.pop %v697
        %v699 = vsel %vm692, %v698, 0.0
        %700 = vadd.xlane.f32.xlu0 %v699
        %v701 = vpop.xlane.xlu0 %700
        %v702 = vrcp.pop %v701
        %v703 = vmul.f32 %v698, %v702
        %704 = vrot.lane.b32.xlu0 %v630, 96
        %v705 = vpop.permute.xlu0 %704
        %v708 = vsel %vm665, %v703, 0
        %710 = vmatpush.msra.mxu0 0.0
        %711 = vmatpush.msra.mxu0 0.0
        %712 = vmatpush.msra.mxu0 0.0
        %713 = vmatpush.msra.mxu0 0.0
        %714 = vmatpush.msra.mxu0 0.0
        %715 = vmatpush.msra.mxu0 0.0
        %716 = vmatpush.msra.mxu0 0.0
        %717 = vmatpush.msra.mxu0 0.0
        %718 = vmatpush.msra.mxu0 0.0
        %719 = vmatpush.msra.mxu0 0.0
        %720 = vmatpush.msra.mxu0 0.0
        %721 = vmatpush.msra.mxu0 0.0
        %722 = vmatpush.msra.mxu0 0.0
        %723 = vmatpush.msra.mxu0 0.0
        %724 = vmatpush.msra.mxu0 0.0
        %725 = vmatpush.msra.mxu0 %v705
        %726 = vmatmul.f32.gmra.mxu0 %v708
        %v727 = vpop.f32.mrf.mxu0
        %v728 = vadd.f32 0.0, %v727
        %729 = vdwg.mxu0
        %v730 = vpack.c.bf16 %v728, %v728
        %v731 = vld [vmem:[#allocation2] sm:$0xf]
        %v733 = vsel %vm665, %v730, 0
        %vm735 = vcmask 1043456
        %v737 = vsel %vm735, %v731, 0
        %739 = vmatpush.bf16.msra.mxu0 0
        %740 = vmatpush.bf16.msra.mxu0 0
        %741 = vmatpush.bf16.msra.mxu0 0
        %742 = vmatpush.bf16.msra.mxu0 0
        %743 = vmatpush.bf16.msra.mxu0 0
        %744 = vmatpush.bf16.msra.mxu0 0
        %745 = vmatpush.bf16.msra.mxu0 0
        %746 = vmatpush.bf16.msra.mxu0 %v737
        %747 = vmatmul.bf16.gmra.mxu0 %v733
        %v748 = vpop.f32.mrf.mxu0
        %v749 = vadd.f32 0.0, %v748
        %v750 = vpop.f32.mrf.mxu0
        %751 = vdwg.mxu0
        %v752 = vadd.f32 %v664, %v749
        %753 = vrot.lane.b32.xlu0 %v663, 120
        %v754 = vpop.permute.xlu0 %753
        %755 = vrot.lane.b32.xlu0 %v630, 120
        %v756 = vpop.permute.xlu0 %755
        %v757 = vsel %vm665, %v754, 0
        %v759 = vsel %vm665, %v756, 0
        %761 = vmatpush.xpose.msra.mxu0 0.0
        %762 = vmatpush.xpose.msra.mxu0 0.0
        %763 = vmatpush.xpose.msra.mxu0 0.0
        %764 = vmatpush.xpose.msra.mxu0 0.0
        %765 = vmatpush.xpose.msra.mxu0 0.0
        %766 = vmatpush.xpose.msra.mxu0 0.0
        %767 = vmatpush.xpose.msra.mxu0 0.0
        %768 = vmatpush.xpose.msra.mxu0 0.0
        %769 = vmatpush.xpose.msra.mxu0 0.0
        %770 = vmatpush.xpose.msra.mxu0 0.0
        %771 = vmatpush.xpose.msra.mxu0 0.0
        %772 = vmatpush.xpose.msra.mxu0 0.0
        %773 = vmatpush.xpose.msra.mxu0 0.0
        %774 = vmatpush.xpose.msra.mxu0 0.0
        %775 = vmatpush.xpose.msra.mxu0 0.0
        %776 = vmatpush.xpose.msra.mxu0 %v759
        %777 = vmatmul.f32.gmra.mxu0 %v757
        %v778 = vpop.f32.mrf.mxu0
        %v779 = vadd.f32 0.0, %v778
        %780 = vdwg.mxu0
        %v781 = vsel %vm692, %v779, -inf
        %782 = vmax.xlane.f32.xlu0 %v781
        %v783 = vpop.xlane.xlu0 %782
        %v784 = vsub.f32 %v779, %v783
        %v785 = vmul.f32 %v784, 1.442695
        %v786 = vpow.pop %v785
        %v787 = vsel %vm692, %v786, 0.0
        %788 = vadd.xlane.f32.xlu0 %v787
        %v789 = vpop.xlane.xlu0 %788
        %v790 = vrcp.pop %v789
        %v791 = vmul.f32 %v786, %v790
        %792 = vrot.lane.b32.xlu0 %v630, 88
        %v793 = vpop.permute.xlu0 %792
        %v796 = vsel %vm665, %v791, 0
        %798 = vmatpush.msra.mxu0 0.0
        %799 = vmatpush.msra.mxu0 0.0
        %800 = vmatpush.msra.mxu0 0.0
        %801 = vmatpush.msra.mxu0 0.0
        %802 = vmatpush.msra.mxu0 0.0
        %803 = vmatpush.msra.mxu0 0.0
        %804 = vmatpush.msra.mxu0 0.0
        %805 = vmatpush.msra.mxu0 0.0
        %806 = vmatpush.msra.mxu0 0.0
        %807 = vmatpush.msra.mxu0 0.0
        %808 = vmatpush.msra.mxu0 0.0
        %809 = vmatpush.msra.mxu0 0.0
        %810 = vmatpush.msra.mxu0 0.0
        %811 = vmatpush.msra.mxu0 0.0
        %812 = vmatpush.msra.mxu0 0.0
        %813 = vmatpush.msra.mxu0 %v793
        %814 = vmatmul.f32.gmra.mxu0 %v796
        %v815 = vpop.f32.mrf.mxu0
        %v816 = vadd.f32 0.0, %v815
        %817 = vdwg.mxu0
        %v818 = vpack.c.bf16 %v816, %v816
        %s819 = scalar_lea.vmem [#allocation2], 4
        %v820 = vld [vmem:[%s819] sm:$0xf]
        %v822 = vsel %vm665, %v818, 0
        %v825 = vsel %vm735, %v820, 0
        %827 = vmatpush.bf16.msra.mxu0 0
        %828 = vmatpush.bf16.msra.mxu0 0
        %829 = vmatpush.bf16.msra.mxu0 0
        %830 = vmatpush.bf16.msra.mxu0 0
        %831 = vmatpush.bf16.msra.mxu0 0
        %832 = vmatpush.bf16.msra.mxu0 0
        %833 = vmatpush.bf16.msra.mxu0 0
        %834 = vmatpush.bf16.msra.mxu0 %v825
        %835 = vmatmul.bf16.gmra.mxu0 %v822
        %v836 = vpop.f32.mrf.mxu0
        %v837 = vadd.f32 0.0, %v836
        %v838 = vpop.f32.mrf.mxu0
        %839 = vdwg.mxu0
        %v840 = vadd.f32 %v752, %v837
        %841 = vrot.lane.b32.xlu0 %v663, 112
        %v842 = vpop.permute.xlu0 %841
        %843 = vrot.lane.b32.xlu0 %v630, 112
        %v844 = vpop.permute.xlu0 %843
        %v845 = vsel %vm665, %v842, 0
        %v847 = vsel %vm665, %v844, 0
        %849 = vmatpush.xpose.msra.mxu0 0.0
        %850 = vmatpush.xpose.msra.mxu0 0.0
        %851 = vmatpush.xpose.msra.mxu0 0.0
        %852 = vmatpush.xpose.msra.mxu0 0.0
        %853 = vmatpush.xpose.msra.mxu0 0.0
        %854 = vmatpush.xpose.msra.mxu0 0.0
        %855 = vmatpush.xpose.msra.mxu0 0.0
        %856 = vmatpush.xpose.msra.mxu0 0.0
        %857 = vmatpush.xpose.msra.mxu0 0.0
        %858 = vmatpush.xpose.msra.mxu0 0.0
        %859 = vmatpush.xpose.msra.mxu0 0.0
        %860 = vmatpush.xpose.msra.mxu0 0.0
        %861 = vmatpush.xpose.msra.mxu0 0.0
        %862 = vmatpush.xpose.msra.mxu0 0.0
        %863 = vmatpush.xpose.msra.mxu0 0.0
        %864 = vmatpush.xpose.msra.mxu0 %v847
        %865 = vmatmul.f32.gmra.mxu0 %v845
        %v866 = vpop.f32.mrf.mxu0
        %v867 = vadd.f32 0.0, %v866
        %868 = vdwg.mxu0
        %v869 = vsel %vm692, %v867, -inf
        %870 = vmax.xlane.f32.xlu0 %v869
        %v871 = vpop.xlane.xlu0 %870
        %v872 = vsub.f32 %v867, %v871
        %v873 = vmul.f32 %v872, 1.442695
        %v874 = vpow.pop %v873
        %v875 = vsel %vm692, %v874, 0.0
        %876 = vadd.xlane.f32.xlu0 %v875
        %v877 = vpop.xlane.xlu0 %876
        %v878 = vrcp.pop %v877
        %v879 = vmul.f32 %v874, %v878
        %880 = vrot.lane.b32.xlu0 %v630, 80
        %v881 = vpop.permute.xlu0 %880
        %v884 = vsel %vm665, %v879, 0
        %886 = vmatpush.msra.mxu0 0.0
        %887 = vmatpush.msra.mxu0 0.0
        %888 = vmatpush.msra.mxu0 0.0
        %889 = vmatpush.msra.mxu0 0.0
        %890 = vmatpush.msra.mxu0 0.0
        %891 = vmatpush.msra.mxu0 0.0
        %892 = vmatpush.msra.mxu0 0.0
        %893 = vmatpush.msra.mxu0 0.0
        %894 = vmatpush.msra.mxu0 0.0
        %895 = vmatpush.msra.mxu0 0.0
        %896 = vmatpush.msra.mxu0 0.0
        %897 = vmatpush.msra.mxu0 0.0
        %898 = vmatpush.msra.mxu0 0.0
        %899 = vmatpush.msra.mxu0 0.0
        %900 = vmatpush.msra.mxu0 0.0
        %901 = vmatpush.msra.mxu0 %v881
        %902 = vmatmul.f32.gmra.mxu0 %v884
        %v903 = vpop.f32.mrf.mxu0
        %v904 = vadd.f32 0.0, %v903
        %905 = vdwg.mxu0
        %v906 = vpack.c.bf16 %v904, %v904
        %s907 = scalar_lea.vmem [#allocation2], 8
        %v908 = vld [vmem:[%s907] sm:$0xf]
        %v910 = vsel %vm665, %v906, 0
        %v913 = vsel %vm735, %v908, 0
        %915 = vmatpush.bf16.msra.mxu0 0
        %916 = vmatpush.bf16.msra.mxu0 0
        %917 = vmatpush.bf16.msra.mxu0 0
        %918 = vmatpush.bf16.msra.mxu0 0
        %919 = vmatpush.bf16.msra.mxu0 0
        %920 = vmatpush.bf16.msra.mxu0 0
        %921 = vmatpush.bf16.msra.mxu0 0
        %922 = vmatpush.bf16.msra.mxu0 %v913
        %923 = vmatmul.bf16.gmra.mxu0 %v910
        %v924 = vpop.f32.mrf.mxu0
        %v925 = vadd.f32 0.0, %v924
        %v926 = vpop.f32.mrf.mxu0
        %927 = vdwg.mxu0
        %v928 = vadd.f32 %v840, %v925
        %929 = vrot.lane.b32.xlu0 %v663, 104
        %v930 = vpop.permute.xlu0 %929
        %931 = vrot.lane.b32.xlu0 %v630, 104
        %v932 = vpop.permute.xlu0 %931
        %v933 = vsel %vm665, %v930, 0
        %v935 = vsel %vm665, %v932, 0
        %937 = vmatpush.xpose.msra.mxu0 0.0
        %938 = vmatpush.xpose.msra.mxu0 0.0
        %939 = vmatpush.xpose.msra.mxu0 0.0
        %940 = vmatpush.xpose.msra.mxu0 0.0
        %941 = vmatpush.xpose.msra.mxu0 0.0
        %942 = vmatpush.xpose.msra.mxu0 0.0
        %943 = vmatpush.xpose.msra.mxu0 0.0
        %944 = vmatpush.xpose.msra.mxu0 0.0
        %945 = vmatpush.xpose.msra.mxu0 0.0
        %946 = vmatpush.xpose.msra.mxu0 0.0
        %947 = vmatpush.xpose.msra.mxu0 0.0
        %948 = vmatpush.xpose.msra.mxu0 0.0
        %949 = vmatpush.xpose.msra.mxu0 0.0
        %950 = vmatpush.xpose.msra.mxu0 0.0
        %951 = vmatpush.xpose.msra.mxu0 0.0
        %952 = vmatpush.xpose.msra.mxu0 %v935
        %953 = vmatmul.f32.gmra.mxu0 %v933
        %v954 = vpop.f32.mrf.mxu0
        %v955 = vadd.f32 0.0, %v954
        %956 = vdwg.mxu0
        %v957 = vsel %vm692, %v955, -inf
        %958 = vmax.xlane.f32.xlu0 %v957
        %v959 = vpop.xlane.xlu0 %958
        %v960 = vsub.f32 %v955, %v959
        %v961 = vmul.f32 %v960, 1.442695
        %v962 = vpow.pop %v961
        %v963 = vsel %vm692, %v962, 0.0
        %964 = vadd.xlane.f32.xlu0 %v963
        %v965 = vpop.xlane.xlu0 %964
        %v966 = vrcp.pop %v965
        %v967 = vmul.f32 %v962, %v966
        %968 = vrot.lane.b32.xlu0 %v630, 72
        %v969 = vpop.permute.xlu0 %968
        %v972 = vsel %vm665, %v967, 0
        %974 = vmatpush.msra.mxu0 0.0
        %975 = vmatpush.msra.mxu0 0.0
        %976 = vmatpush.msra.mxu0 0.0
        %977 = vmatpush.msra.mxu0 0.0
        %978 = vmatpush.msra.mxu0 0.0
        %979 = vmatpush.msra.mxu0 0.0
        %980 = vmatpush.msra.mxu0 0.0
        %981 = vmatpush.msra.mxu0 0.0
        %982 = vmatpush.msra.mxu0 0.0
        %983 = vmatpush.msra.mxu0 0.0
        %984 = vmatpush.msra.mxu0 0.0
        %985 = vmatpush.msra.mxu0 0.0
        %986 = vmatpush.msra.mxu0 0.0
        %987 = vmatpush.msra.mxu0 0.0
        %988 = vmatpush.msra.mxu0 0.0
        %989 = vmatpush.msra.mxu0 %v969
        %990 = vmatmul.f32.gmra.mxu0 %v972
        %v991 = vpop.f32.mrf.mxu0
        %v992 = vadd.f32 0.0, %v991
        %993 = vdwg.mxu0
        %v994 = vpack.c.bf16 %v992, %v992
        %s995 = scalar_lea.vmem [#allocation2], 12
        %v996 = vld [vmem:[%s995] sm:$0xf]
        %v998 = vsel %vm665, %v994, 0
        %v1001 = vsel %vm735, %v996, 0
        %1003 = vmatpush.bf16.msra.mxu0 0
        %1004 = vmatpush.bf16.msra.mxu0 0
        %1005 = vmatpush.bf16.msra.mxu0 0
        %1006 = vmatpush.bf16.msra.mxu0 0
        %1007 = vmatpush.bf16.msra.mxu0 0
        %1008 = vmatpush.bf16.msra.mxu0 0
        %1009 = vmatpush.bf16.msra.mxu0 0
        %1010 = vmatpush.bf16.msra.mxu0 %v1001
        %1011 = vmatmul.bf16.gmra.mxu0 %v998
        %v1012 = vpop.f32.mrf.mxu0
        %v1013 = vadd.f32 0.0, %v1012
        %v1014 = vpop.f32.mrf.mxu0
        %1015 = vdwg.mxu0
        %v1016 = vadd.f32 %v928, %v1013
        %v1017 = vadd.f32 %v594, %v1016
        %v1018 = vld [vmem:[%s7] sm:$0x1]
        %v1019 = vld [vmem:[%s8] sm:$0x1]
        %vm1020 = vcmask 253952
        %v1021 = vsel %vm1020, %v1017, 0.0
        %1022 = vadd.xlane.f32.xlu0 %v1021
        %v1023 = vpop.xlane.xlu0 %1022
        %v1024 = vrcp.pop 32.0
        %v1025 = vmul.f32 32.0, %v1024
        %v1026 = vsub.f32 1.0, %v1025
        %v1027 = vmul.f32 %v1024, %v1026
        %v1028 = vadd.f32 %v1024, %v1027
        %vm1029 = vweird.f32 %v1024
        %v1030 = vsel %vm1029, %v1024, %v1028
        %v1031 = vmul.f32 %v1023, %v1030
        %v1032 = vsub.f32 %v1017, %v1031
        %v1033 = vmul.f32 %v1032, %v1032
        %v1034 = vsel %vm1020, %v1033, 0.0
        %1035 = vadd.xlane.f32.xlu0 %v1034
        %v1036 = vpop.xlane.xlu0 %1035
        %v1037 = vmul.f32 %v1036, %v1030
        %v1038 = vadd.f32 %v1037, 1e-12
        %v1039 = vrsqrt.pop %v1038
        %v1040 = vmul.f32 %v1039, %v1038
        %v1041 = vmul.f32 %v1040, %v1039
        %v1042 = vmul.f32 0.5, %v1041
        %v1043 = vsub.f32 1.5, %v1042
        %v1044 = vmul.f32 %v1039, %v1043
        %vm1045 = vweird.f32 %v1038
        %vm1046 = vweird.f32 %v1039
        %vm1047 = vmor %vm1045, %vm1046
        %v1048 = vsel %vm1047, %v1039, %v1044
        %v1049 = vmul.f32 %v1032, %v1048
        %v1050 = vmul.f32 %v1049, %v1018
        %v1051 = vadd.f32 %v1050, %v1019
        %v1052 = vpack.c.bf16 %v1051, %v1051
        %v1053 = vld [vmem:[#allocation5] sm:$0xf]
        %v1054 = vld [vmem:[#allocation5 + $0x4] sm:$0xf]
        %v1055 = vld [vmem:[#allocation5 + $0x8] sm:$0xf]
        %v1056 = vld [vmem:[#allocation5 + $0xc] sm:$0xf]
        %v1057 = vld [vmem:[%s10] sm:$0x1]
        %v1062 = vunpack.c.l.b16 %v1053
        %v1063 = vunpack.c.l.b16 %v1054
        %v1064 = vunpack.c.l.b16 %v1055
        %v1065 = vunpack.c.l.b16 %v1056
        %v1066 = vpack.c.b16 %v1063, %v1062
        %v1067 = vpack.c.b16 %v1065, %v1064
        %v1071 = vsel %vm616, %v1052, 0
        %1073 = vmatpush.bf16.msra.mxu0 0
        %1074 = vmatpush.bf16.msra.mxu0 0
        %1075 = vmatpush.bf16.msra.mxu0 0
        %1076 = vmatpush.bf16.msra.mxu0 0
        %1077 = vmatpush.bf16.msra.mxu0 0
        %1078 = vmatpush.bf16.msra.mxu0 0
        %1079 = vmatpush.bf16.msra.mxu0 %v1067
        %1080 = vmatpush.bf16.msra.mxu0 %v1066
        %1081 = vmatmul.bf16.gmra.mxu0 %v1071
        %v1082 = vpop.f32.mrf.mxu0
        %v1083 = vadd.f32 %v1057, %v1082
        %v1084 = vpop.f32.mrf.mxu0
        %1085 = vdwg.mxu0
        %v1086 = vmul.f32 %v1083, %v1083
        %v1087 = vmul.f32 %v1083, %v1086
        %v1088 = vmul.f32 %v1087, 0.044715
        %v1089 = vadd.f32 %v1083, %v1088
        %v1090 = vmul.f32 %v1089, 0.7978846
        %v1091 = vtanh.pop %v1090
        %v1092 = vadd.f32 %v1091, 1.0
        %v1093 = vmul.f32 %v1092, 0.5
        %v1094 = vmul.f32 %v1083, %v1093
        %v1095 = vpack.c.bf16 %v1094, %v1094
        %v1096 = vld [vmem:[%s11] sm:$0xf]
        %v1097 = vld [vmem:[%s11 + $0x4] sm:$0xf]
        %v1098 = vld [vmem:[%s11 + $0x8] sm:$0xf]
        %v1099 = vld [vmem:[%s11 + $0xc] sm:$0xf]
        %v1100 = vld [vmem:[%s11 + $0x10] sm:$0xf]
        %v1101 = vld [vmem:[%s11 + $0x14] sm:$0xf]
        %v1102 = vld [vmem:[%s11 + $0x18] sm:$0xf]
        %v1103 = vld [vmem:[%s11 + $0x1c] sm:$0xf]
        %v1104 = vld [vmem:[%s12] sm:$0x1]
        %v1113 = vunpack.c.l.b16 %v1096
        %v1114 = vunpack.c.l.b16 %v1097
        %v1115 = vunpack.c.l.b16 %v1098
        %v1116 = vunpack.c.l.b16 %v1099
        %v1117 = vunpack.c.l.b16 %v1100
        %v1118 = vunpack.c.l.b16 %v1101
        %v1119 = vunpack.c.l.b16 %v1102
        %v1120 = vunpack.c.l.b16 %v1103
        %v1121 = vpack.c.b16 %v1114, %v1113
        %v1122 = vpack.c.b16 %v1116, %v1115
        %v1123 = vpack.c.b16 %v1118, %v1117
        %v1124 = vpack.c.b16 %v1120, %v1119
        %vm1129 = vcmask 523264
        %v1131 = vsel %vm1129, %v1095, 0
        %1133 = vmatpush.bf16.msra.mxu0 0
        %1134 = vmatpush.bf16.msra.mxu0 0
        %1135 = vmatpush.bf16.msra.mxu0 0
        %1136 = vmatpush.bf16.msra.mxu0 0
        %1137 = vmatpush.bf16.msra.mxu0 %v1124
        %1138 = vmatpush.bf16.msra.mxu0 %v1123
        %1139 = vmatpush.bf16.msra.mxu0 %v1122
        %1140 = vmatpush.bf16.msra.mxu0 %v1121
        %1141 = vmatmul.bf16.gmra.mxu0 %v1131
        %v1142 = vpop.f32.mrf.mxu0
        %v1143 = vadd.f32 %v1104, %v1142
        %v1144 = vpop.f32.mrf.mxu0
        %1145 = vdwg.mxu0
        %v1146 = vadd.f32 %v1051, %v1143
        %v1147 = vld [vmem:[%s13] sm:$0x1]
        %v1148 = vld [vmem:[%s14] sm:$0x1]
        %v1149 = vsel %vm1020, %v1146, 0.0
        %1150 = vadd.xlane.f32.xlu0 %v1149
        %v1151 = vpop.xlane.xlu0 %1150
        %v1152 = vmul.f32 %v1151, %v1030
        %v1153 = vsub.f32 %v1146, %v1152
        %v1154 = vmul.f32 %v1153, %v1153
        %v1155 = vsel %vm1020, %v1154, 0.0
        %1156 = vadd.xlane.f32.xlu0 %v1155
        %v1157 = vpop.xlane.xlu0 %1156
        %v1158 = vmul.f32 %v1157, %v1030
        %v1159 = vadd.f32 %v1158, 1e-12
        %v1160 = vrsqrt.pop %v1159
        %v1161 = vmul.f32 %v1160, %v1159
        %v1162 = vmul.f32 %v1161, %v1160
        %v1163 = vmul.f32 0.5, %v1162
        %v1164 = vsub.f32 1.5, %v1163
        %v1165 = vmul.f32 %v1160, %v1164
        %vm1166 = vweird.f32 %v1159
        %vm1167 = vweird.f32 %v1160
        %vm1168 = vmor %vm1166, %vm1167
        %v1169 = vsel %vm1168, %v1160, %v1165
        %v1170 = vmul.f32 %v1153, %v1169
        %v1171 = vmul.f32 %v1170, %v1147
        %v1172 = vadd.f32 %v1171, %v1148
        %v1173 = vpack.c.bf16 %v1172, %v1172
        %v1174 = vld [vmem:[#allocation7] sm:$0xf]
        %v1175 = vld [vmem:[#allocation7 + $0x4] sm:$0xf]
        %v1176 = vld [vmem:[#allocation7 + $0x8] sm:$0xf]
        %v1177 = vld [vmem:[#allocation7 + $0xc] sm:$0xf]
        %v1178 = vld [vmem:[%s16] sm:$0x1]
        %v1183 = vunpack.c.l.b16 %v1174
        %v1184 = vunpack.c.l.b16 %v1175
        %v1185 = vunpack.c.l.b16 %v1176
        %v1186 = vunpack.c.l.b16 %v1177
        %v1187 = vpack.c.b16 %v1184, %v1183
        %v1188 = vpack.c.b16 %v1186, %v1185
        %v1192 = vsel %vm616, %v1173, 0
        %1194 = vmatpush.bf16.msra.mxu0 0
        %1195 = vmatpush.bf16.msra.mxu0 0
        %1196 = vmatpush.bf16.msra.mxu0 0
        %1197 = vmatpush.bf16.msra.mxu0 0
        %1198 = vmatpush.bf16.msra.mxu0 0
        %1199 = vmatpush.bf16.msra.mxu0 0
        %1200 = vmatpush.bf16.msra.mxu0 %v1188
        %1201 = vmatpush.bf16.msra.mxu0 %v1187
        %1202 = vmatmul.bf16.gmra.mxu0 %v1192
        %v1203 = vpop.f32.mrf.mxu0
        %v1204 = vadd.f32 %v1178, %v1203
        %v1205 = vpop.f32.mrf.mxu0
        %1206 = vdwg.mxu0
        %1207 = vst [vmem:[%s588] sm:$0x1] %v1204
        %s1208 = sand.u32 %s403, 1
        %s1209 = scalar_lea.sflag [#allocation4], %s1208
        %s1210 = sand.u32 %s403, 1
        %s1211 = scalar_lea.vmem [#allocation8], %s1210
        // Predicated region
        $region101: #{tpu_custom_call.1} parent=87 // pred_check
          %p1212 = pneg %p413
        $region102: #{tpu_custom_call.1} parent=87 // pred_check_branch
          %1214 = sbr.rel (%p1212) target = $region104
        $region103: #{tpu_custom_call.1} parent=87 // pred_region
          %1216 = vsyncadd %s1209, 0
          %s1217 = scalar_lea.hbm %s17, %s33
          %s1219 = sshll.u32 %s1211, 4
          %s1220 = int_to_ptr.vmem [resolvable:$true] %s1219
          %s1221 = sshll.u32 %s1217, 4
          %s1222 = int_to_ptr.hbm [resolvable:$true] %s1221
          %1224 = dma.vmem_to_hbm [thread:$0]  %s1220, 16, %s1222, %s1209
        $region104: #{tpu_custom_call.1} parent=87 // pred_fallthru
          _
      $region88: #{tpu_custom_call.1} parent=5 // pred_fallthru
        _
      %p1225 = scmp.le.s32.totalorder 2, %s28
      // Predicated region
      $region105: #{tpu_custom_call.1} parent=5 // pred_check
        %p1226 = pneg %p1225
      $region106: #{tpu_custom_call.1} parent=5 // pred_check_branch
        %1228 = sbr.rel (%p1226) target = $region108
      $region107: #{tpu_custom_call.1} parent=5 // pred_region
        %s1229 = ssub.s32 %s28, 2
        // Predicated region
        $region109: #{tpu_custom_call.1} parent=107 // pred_check
          %p1230 = pneg %p419
        $region110: #{tpu_custom_call.1} parent=107 // pred_check_branch
          %1232 = sbr.rel (%p1230) target = $region112
        $region111: #{tpu_custom_call.1} parent=107 // pred_region
          %s1233 = sand.u32 %s404, 1
          %s1234 = scalar_lea.sflag [#allocation4], %s1233
          %s1235 = sand.u32 %s404, 1
          %s1236 = scalar_lea.vmem [#allocation8], %s1235
          %1238 = dma.done %s1234, 16
        $region112: #{tpu_custom_call.1} parent=107 // pred_fallthru
          _
      $region108: #{tpu_custom_call.1} parent=5 // pred_fallthru
        _
    $region6: #{tpu_custom_call.1} parent=1 // loop_footer
      %s32 = sadd.s32 1, %s28
    $region7: #{tpu_custom_call.1} parent=1 // loop_footer_branch
      %27 = sbr.rel target = $region3
    $region8: #{tpu_custom_call.1} parent=1 // loop_exit
      _
    %1239 = vsyncpa [#allocation3], 1
    %s1240 = scalar_lea.sflag [#allocation3], 1
    %1241 = vsyncpa %s1240, 1
    %1242 = vsyncpa [#allocation6], 1
    %1243 = vsyncpa [#allocation4], 1
    %s1244 = scalar_lea.sflag [#allocation4], 1
    %1245 = vsyncpa %s1244, 1

</llo_original>
